<compile_context>
chip_gen: v7x
topology: tpu7x:2x2x1
jax: 0.10.0
libtpu: 0.0.40
codegen_flags: <defaults>
</compile_context>

<pallas_src>
import functools
import math

import jax
import jax.numpy as jnp
from jax import lax
from jax.experimental import pallas as pl
from jax.experimental.pallas import tpu as pltpu

HEADS = 8          # Attention defaults in the PyTorch module
DIM_HEAD = 64
BN_EPS = 1e-5
_HALO = 8          # aligned halo so the interior store starts on a sublane tile


# ---------------------------------------------------------------------------
# Fused conv + BN(eval)/bias + (sum / residual) + LeakyReLU kernel
# ---------------------------------------------------------------------------
def _conv_kernel(*refs, K, slope, has_res, num_x):
    x_refs = refs[:num_x]
    idx = num_x
    res_ref = refs[idx] if has_res else None
    idx += int(has_res)
    w_ref, sb_ref, o_ref, xpad_ref = refs[idx:idx + 4]

    P = K // 2
    _, H, W, Cout = o_ref.shape
    Cin = x_refs[0].shape[3]
    A = _HALO

    # Fused input sum (e.g. the three CTU branches feeding final_conv).
    xin = x_refs[0][0]
    for xr in x_refs[1:]:
        xin = xin + xr[0]

    # Zero-padded staging buffer held in VMEM; interior store is tile-aligned.
    xpad_ref[...] = jnp.zeros_like(xpad_ref)
    xpad_ref[A:A + H, A:A + W, :] = xin

    cout1 = (Cin > 1 and Cout == 1)        # weights pre-transposed to (KK,1,Cin)
    acc = None
    for dy in range(K):                    # per-tap whole-image accumulation
        for dx in range(K):
            y0 = A - P + dy
            x0 = A - P + dx
            tap = xpad_ref[y0:y0 + H, x0:x0 + W, :]          # (H, W, Cin)
            wt = w_ref[dy * K + dx]
            if Cin == 1 or Cout == 1:
                contrib = tap * wt                           # VPU broadcast MAC
            else:
                contrib = jnp.dot(
                    tap.reshape(H * W, Cin), wt,
                    preferred_element_type=jnp.float32).reshape(H, W, Cout)
            acc = contrib if acc is None else acc + contrib
    if cout1:
        acc = jnp.sum(acc, axis=-1, keepdims=True)           # single lane reduce

    # Folded BN(eval) / bias epilogue (broadcast emitted once, outside the taps)
    acc = acc * sb_ref[0:1, :] + sb_ref[1:2, :]
    if has_res:
        acc = acc + res_ref[0]
    if slope != 1.0:
        acc = jnp.where(acc >= 0.0, acc, slope * acc)        # LeakyReLU / ReLU
    o_ref[0] = acc.astype(o_ref.dtype)


@functools.lru_cache(maxsize=None)
def _build_conv(N, H, W, Cin, Cout, K, slope, has_res, num_x):
    kernel = functools.partial(_conv_kernel, K=K, slope=slope,
                               has_res=has_res, num_x=num_x)
    cout1 = (Cin > 1 and Cout == 1)
    w_block = (K * K, 1, Cin) if cout1 else (K * K, Cin, Cout)
    in_specs = [pl.BlockSpec((1, H, W, Cin), lambda n: (n, 0, 0, 0))
                for _ in range(num_x)]
    if has_res:
        in_specs.append(pl.BlockSpec((1, H, W, Cout), lambda n: (n, 0, 0, 0)))
    in_specs += [pl.BlockSpec(w_block, lambda n: (0, 0, 0)),
                 pl.BlockSpec((2, Cout), lambda n: (0, 0))]
    call = pl.pallas_call(
        kernel,
        out_shape=jax.ShapeDtypeStruct((N, H, W, Cout), jnp.float32),
        grid=(N,),
        in_specs=in_specs,
        out_specs=pl.BlockSpec((1, H, W, Cout), lambda n: (n, 0, 0, 0)),
        scratch_shapes=[pltpu.VMEM((H + 2 * _HALO, W + 2 * _HALO, Cin),
                                   jnp.float32)],
        compiler_params=pltpu.CompilerParams(
            dimension_semantics=("parallel",)),
    )
    return jax.jit(call)


def conv_bn_act(xs, w_hwio, scale, bias, *, slope, residual=None):
    """Conv(KxK, stride 1, SAME) on the sum of `xs` (NHWC), then per-channel
    scale/bias (+ optional residual) and LeakyReLU(slope)."""
    if not isinstance(xs, (list, tuple)):
        xs = [xs]
    N, H, W, Cin = xs[0].shape
    K, _, _, Cout = w_hwio.shape
    w = w_hwio.astype(jnp.float32).reshape(K * K, Cin, Cout)
    if Cin > 1 and Cout == 1:
        w = jnp.swapaxes(w, 1, 2)                       # (K*K, 1, Cin)
    sb = jnp.stack([scale, bias]).astype(jnp.float32)   # (2, Cout)
    f = _build_conv(N, H, W, Cin, Cout, K, float(slope),
                    residual is not None, len(xs))
    args = list(xs) + ([residual] if residual is not None else []) + [w, sb]
    return f(*args)


def _bn_fold(bn, eps=BN_EPS):
    scale = bn['gamma'] / jnp.sqrt(bn['var'] + eps)
    bias = bn['beta'] - bn['mean'] * scale
    return scale, bias


# ---------------------------------------------------------------------------
# Fused TransAttn kernel: patch-embed -> multi-head attention -> un-embed
# ---------------------------------------------------------------------------
def _transattn_kernel(t_ref, w1_ref, b1_ref, wqkv_ref, wo_ref, bo_ref,
                      w2_ref, b2_ref, o_ref, *, heads, scale):
    x = t_ref[0]                                           # (n_tok, p*p*c)
    emb = jnp.dot(x, w1_ref[...],
                  preferred_element_type=jnp.float32) + b1_ref[...]   # (n, dim)
    trans_b = (((1,), (1,)), ((), ()))
    acc = None
    for h in range(heads):                                 # static unroll
        q = lax.dot_general(emb, wqkv_ref[0, h], trans_b,
                            preferred_element_type=jnp.float32)       # (n, dh)
        k = lax.dot_general(emb, wqkv_ref[1, h], trans_b,
                            preferred_element_type=jnp.float32)
        v = lax.dot_general(emb, wqkv_ref[2, h], trans_b,
                            preferred_element_type=jnp.float32)
        dots = lax.dot_general(q, k, trans_b,
                               preferred_element_type=jnp.float32) * scale
        m = jnp.max(dots, axis=-1, keepdims=True)
        p = jnp.exp(dots - m)
        p = p / jnp.sum(p, axis=-1, keepdims=True)
        oh = jnp.dot(p, v, preferred_element_type=jnp.float32)        # (n, dh)
        ch = jnp.dot(oh, wo_ref[h], preferred_element_type=jnp.float32)
        acc = ch if acc is None else acc + ch                         # (n, dim)
    y = acc + bo_ref[...]
    out = jnp.dot(y, w2_ref[...],
                  preferred_element_type=jnp.float32) + b2_ref[...]   # (n, ppc)
    o_ref[0] = out.astype(o_ref.dtype)


@functools.lru_cache(maxsize=None)
def _build_transattn(N, n_tok, p2c, dim, heads, dh):
    kernel = functools.partial(_transattn_kernel, heads=heads,
                               scale=float(dh) ** -0.5)
    call = pl.pallas_call(
        kernel,
        out_shape=jax.ShapeDtypeStruct((N, n_tok, p2c), jnp.float32),
        grid=(N,),
        in_specs=[
            pl.BlockSpec((1, n_tok, p2c), lambda b: (b, 0, 0)),
            pl.BlockSpec((p2c, dim), lambda b: (0, 0)),
            pl.BlockSpec((1, dim), lambda b: (0, 0)),
            pl.BlockSpec((3, heads, dh, dim), lambda b: (0, 0, 0, 0)),
            pl.BlockSpec((heads, dh, dim), lambda b: (0, 0, 0)),
            pl.BlockSpec((1, dim), lambda b: (0, 0)),
            pl.BlockSpec((dim, p2c), lambda b: (0, 0)),
            pl.BlockSpec((1, p2c), lambda b: (0, 0)),
        ],
        out_specs=pl.BlockSpec((1, n_tok, p2c), lambda b: (b, 0, 0)),
        compiler_params=pltpu.CompilerParams(
            dimension_semantics=("parallel",),
            vmem_limit_bytes=32 * 1024 * 1024),
    )
    return jax.jit(call)


def trans_attn(x, p, patch_size):
    """TransAttn on an NHWC feature map (C == 1 in this module)."""
    N, H, W, C = x.shape
    hh, ww = H // patch_size, W // patch_size
    n_tok = hh * ww
    p2c = patch_size * patch_size * C
    # einops 'b c (h p1) (w p2) -> b (h w) (p1 p2 c)'  (layout glue only)
    t = x.reshape(N, hh, patch_size, ww, patch_size, C)
    t = t.transpose(0, 1, 3, 2, 4, 5).reshape(N, n_tok, p2c)

    dim = p['w1'].shape[1]
    wqkv = p['wqkv'].reshape(dim, 3, HEADS, DIM_HEAD).transpose(1, 2, 3, 0)
    wo = p['wo'].reshape(HEADS, DIM_HEAD, dim)

    f = _build_transattn(N, n_tok, p2c, dim, HEADS, DIM_HEAD)
    out = f(t, p['w1'], p['b1'][None, :], wqkv, wo, p['bo'][None, :],
            p['w2'], p['b2'][None, :])

    y = out.reshape(N, hh, ww, patch_size, patch_size, C)
    return y.transpose(0, 1, 3, 2, 4, 5).reshape(N, H, W, C)


# ---------------------------------------------------------------------------
# Module forward (Pallas)
# ---------------------------------------------------------------------------
def basic_conv(x, p, slope=0.01):
    scale, bias = _bn_fold(p['bn'])
    return conv_bn_act(x, p['w'], scale, bias, slope=slope)


def res_conv(x, p):
    s1, b1 = _bn_fold(p['bn1'])
    y = conv_bn_act(x, p['w1'], s1, b1, slope=0.0)                   # ReLU
    s2, b2 = _bn_fold(p['bn2'])
    return conv_bn_act(y, p['w2'], s2, b2, slope=0.0, residual=x)    # +x, ReLU


def ctu_forward(x, p, patch_size):
    b1 = basic_conv(x, p['b1c1'])
    b1 = trans_attn(b1, p['b1t'], patch_size)
    b1 = basic_conv(b1, p['b1c2'])

    b2 = basic_conv(x, p['b2c1'])
    b2 = res_conv(b2, p['b2r'])
    b2 = basic_conv(b2, p['b2c2'])

    b3 = basic_conv(x, p['b3c1'])
    b3 = trans_attn(b3, p['b3t'], patch_size)
    b3 = basic_conv(b3, p['b3c2'])

    cout = p['final_w'].shape[3]
    ones = jnp.ones((cout,), jnp.float32)
    # branch sum fused into final_conv (no extra HBM round trip)
    return conv_bn_act([b1, b2, b3], p['final_w'], ones, p['final_b'], slope=1.0)


def gcm_forward_pallas(params, x_nchw, patch_size):
    x = jnp.transpose(x_nchw, (0, 2, 3, 1)).astype(jnp.float32)
    for ctu_p in params:
        x = ctu_forward(x, ctu_p, patch_size)
    return jnp.transpose(x, (0, 3, 1, 2))


# ---------------------------------------------------------------------------
# Parameters
# ---------------------------------------------------------------------------
def _normal(key, shape, std):
    return std * jax.random.normal(key, shape, jnp.float32)


def _init_bn(key, c):
    kg, kb, km, kv = jax.random.split(key, 4)
    return dict(gamma=1.0 + 0.1 * jax.random.normal(kg, (c,), jnp.float32),
                beta=0.1 * jax.random.normal(kb, (c,), jnp.float32),
                mean=0.1 * jax.random.normal(km, (c,), jnp.float32),
                var=0.9 + 0.2 * jnp.abs(jax.random.normal(kv, (c,), jnp.float32)))


def _init_conv_w(key, K, ci, co):
    return _normal(key, (K, K, ci, co), 1.0 / math.sqrt(K * K * ci))


def _init_basic(key, K, ci, co):
    k1, k2 = jax.random.split(key)
    return dict(w=_init_conv_w(k1, K, ci, co), bn=_init_bn(k2, co))


def _init_res(key, c):
    k1, k2, k3, k4 = jax.random.split(key, 4)
    return dict(w1=_init_conv_w(k1, 3, c, c), bn1=_init_bn(k2, c),
                w2=_init_conv_w(k3, 3, c, c), bn2=_init_bn(k4, c))


def _init_transattn(key, p2c, dim):
    inner = HEADS * DIM_HEAD
    ks = jax.random.split(key, 7)
    return dict(
        w1=_normal(ks[0], (p2c, dim), 1.0 / math.sqrt(p2c)),
        b1=_normal(ks[1], (dim,), 0.02),
        wqkv=_normal(ks[2], (dim, 3 * inner), 1.0 / math.sqrt(dim)),
        wo=_normal(ks[3], (inner, dim), 1.0 / math.sqrt(inner)),
        bo=_normal(ks[4], (dim,), 0.02),
        w2=_normal(ks[5], (dim, p2c), 1.0 / math.sqrt(dim)),
        b2=_normal(ks[6], (p2c,), 0.02))


def _init_ctu(key, cin, cout, patch_size, dim):
    mid = 1
    p2c = patch_size * patch_size * mid
    ks = jax.random.split(key, 11)
    return dict(
        b1c1=_init_basic(ks[0], 3, cin, mid),
        b1t=_init_transattn(ks[1], p2c, dim),
        b1c2=_init_basic(ks[2], 3, mid, mid),
        b2c1=_init_basic(ks[3], 5, cin, mid),
        b2r=_init_res(ks[4], mid),
        b2c2=_init_basic(ks[5], 5, mid, mid),
        b3c1=_init_basic(ks[6], 7, cin, mid),
        b3t=_init_transattn(ks[7], p2c, dim),
        b3c2=_init_basic(ks[8], 3, mid, mid),
        final_w=_init_conv_w(ks[9], 3, mid, cout),
        final_b=_normal(ks[10], (cout,), 0.02))


def init_gcm(key, in_ch, out_ch, patch_size, dim):
    mid = 4
    k1, k2, k3 = jax.random.split(key, 3)
    return [_init_ctu(k1, in_ch, mid, patch_size, dim),
            _init_ctu(k2, mid, mid, patch_size, dim),
            _init_ctu(k3, mid, out_ch, patch_size, dim)]


# ---------------------------------------------------------------------------
# Pure-JAX reference (eval-mode BN, dropout=0)
# ---------------------------------------------------------------------------
def _ref_conv(x, w_hwio):
    return lax.conv_general_dilated(x, w_hwio, (1, 1), 'SAME',
                                    dimension_numbers=('NHWC', 'HWIO', 'NHWC'))


def _ref_bn(x, bn):
    return (x - bn['mean']) / jnp.sqrt(bn['var'] + BN_EPS) * bn['gamma'] + bn['beta']


def _leaky(x, slope):
    return jnp.where(x >= 0, x, slope * x)


def _ref_basic(x, p, slope=0.01):
    return _leaky(_ref_bn(_ref_conv(x, p['w']), p['bn']), slope)


def _ref_res(x, p):
    y = jax.nn.relu(_ref_bn(_ref_conv(x, p['w1']), p['bn1']))
    y = _ref_bn(_ref_conv(y, p['w2']), p['bn2'])
    return jax.nn.relu(y + x)


def _ref_transattn(x, p, patch_size):
    N, H, W, C = x.shape
    hh, ww = H // patch_size, W // patch_size
    n_tok = hh * ww
    t = x.reshape(N, hh, patch_size, ww, patch_size, C)
    t = t.transpose(0, 1, 3, 2, 4, 5).reshape(N, n_tok, patch_size * patch_size * C)
    emb = t @ p['w1'] + p['b1']
    qkv = emb @ p['wqkv']
    q, k, v = jnp.split(qkv, 3, axis=-1)

    def split_heads(a):
        return a.reshape(N, n_tok, HEADS, DIM_HEAD).transpose(0, 2, 1, 3)

    q, k, v = split_heads(q), split_heads(k), split_heads(v)
    dots = jnp.einsum('bhid,bhjd->bhij', q, k) * (DIM_HEAD ** -0.5)
    attn = jax.nn.softmax(dots, axis=-1)
    o = jnp.einsum('bhij,bhjd->bhid', attn, v)
    o = o.transpose(0, 2, 1, 3).reshape(N, n_tok, HEADS * DIM_HEAD)
    y = o @ p['wo'] + p['bo']
    y = y @ p['w2'] + p['b2']
    y = y.reshape(N, hh, ww, patch_size, patch_size, C)
    return y.transpose(0, 1, 3, 2, 4, 5).reshape(N, H, W, C)


def _ref_ctu(x, p, patch_size):
    b1 = _ref_basic(x, p['b1c1'])
    b1 = _ref_transattn(b1, p['b1t'], patch_size)
    b1 = _ref_basic(b1, p['b1c2'])
    b2 = _ref_basic(x, p['b2c1'])
    b2 = _ref_res(b2, p['b2r'])
    b2 = _ref_basic(b2, p['b2c2'])
    b3 = _ref_basic(x, p['b3c1'])
    b3 = _ref_transattn(b3, p['b3t'], patch_size)
    b3 = _ref_basic(b3, p['b3c2'])
    s = b1 + b2 + b3
    return _ref_conv(s, p['final_w']) + p['final_b']


def gcm_forward_ref(params, x_nchw, patch_size):
    x = jnp.transpose(x_nchw, (0, 2, 3, 1)).astype(jnp.float32)
    for p in params:
        x = _ref_ctu(x, p, patch_size)
    return jnp.transpose(x, (0, 3, 1, 2))


# ---------------------------------------------------------------------------
if __name__ == "__main__":
    IN_CH, OUT_CH = 4, 8
    N, IMG, PATCH, DIM = 2, 16, 8, 512

    key = jax.random.PRNGKey(0)
    kx, kp = jax.random.split(key)
    x = jax.random.normal(kx, (N, IN_CH, IMG, IMG), jnp.float32)   # NCHW
    params = init_gcm(kp, IN_CH, OUT_CH, PATCH, DIM)

    out = jax.block_until_ready(gcm_forward_pallas(params, x, PATCH))
    ref = jax.block_until_ready(gcm_forward_ref(params, x, PATCH))

    assert out.shape == (N, OUT_CH, IMG, IMG), out.shape
    err = float(jnp.max(jnp.abs(out - ref)))
    tol = 1e-3 * max(1.0, float(jnp.max(jnp.abs(ref))))
    if not (err <= tol):
        raise AssertionError(f"mismatch vs reference: max abs err {err} (tol {tol})")
    print("KERNEL_OK")
</pallas_src>

<mosaic_0001>
module attributes {stable_mosaic.version = 11 : i64} {
  func.func @_conv_kernel(%arg0: i32, %arg1: memref<1x16x16x4xf32, #tpu.memory_space<vmem>>, %arg2: memref<9x1x4xf32, #tpu.memory_space<vmem>>, %arg3: memref<2x1xf32, #tpu.memory_space<vmem>>, %arg4: memref<1x16x16x1xf32, #tpu.memory_space<vmem>>, %arg5: memref<32x32x4xf32, #tpu.memory_space<vmem>>) attributes {dimension_semantics = [#tpu.dimension_semantics<parallel>], iteration_bounds = array<i64: 2>, scalar_prefetch = 0 : i64, scratch_operands = 1 : i64, tpu.core_type = #tpu.core_type<tc>, window_params = [{transform_indices = @transform_0, window_bounds = array<i64: 1, 16, 16, 4>}, {pipeline_mode = #tpu.pipeline_mode<synchronous>, transform_indices = @transform_1, window_bounds = array<i64: 9, 1, 4>}, {pipeline_mode = #tpu.pipeline_mode<synchronous>, transform_indices = @transform_2, window_bounds = array<i64: 2, 1>}, {transform_indices = @transform_3, window_bounds = array<i64: 1, 16, 16, 1>}]} {
    %c0 = arith.constant 0 : index
    %c0_0 = arith.constant 0 : index
    %c0_1 = arith.constant 0 : index
    %c0_2 = arith.constant 0 : index
    %0 = vector.load %arg1[%c0, %c0_0, %c0_1, %c0_2] : memref<1x16x16x4xf32, #tpu.memory_space<vmem>>, vector<1x16x16x4xf32>
    %1 = vector.shape_cast %0 : vector<1x16x16x4xf32> to vector<16x16x4xf32>
    %cst = arith.constant 0.000000e+00 : f32
    %2 = vector.broadcast %cst : f32 to vector<32x32x4xf32>
    %c0_3 = arith.constant 0 : index
    %c0_4 = arith.constant 0 : index
    %c0_5 = arith.constant 0 : index
    %3 = vector.load %arg5[%c0_3, %c0_4, %c0_5] : memref<32x32x4xf32, #tpu.memory_space<vmem>>, vector<32x32x4xf32>
    tpu.vector_store %arg5[%c0_3, %c0_4, %c0_5], %2 {strides = array<i32>} : memref<32x32x4xf32, #tpu.memory_space<vmem>>, vector<32x32x4xf32>,
    %c8 = arith.constant 8 : index
    %c8_6 = arith.constant 8 : index
    %c0_7 = arith.constant 0 : index
    %4 = vector.load %arg5[%c8, %c8_6, %c0_7] : memref<32x32x4xf32, #tpu.memory_space<vmem>>, vector<16x16x4xf32>
    tpu.vector_store %arg5[%c8, %c8_6, %c0_7], %1 {strides = array<i32>} : memref<32x32x4xf32, #tpu.memory_space<vmem>>, vector<16x16x4xf32>,
    %c7 = arith.constant 7 : index
    %c7_8 = arith.constant 7 : index
    %c0_9 = arith.constant 0 : index
    %5 = vector.load %arg5[%c7, %c7_8, %c0_9] : memref<32x32x4xf32, #tpu.memory_space<vmem>>, vector<16x16x4xf32>
    %c0_10 = arith.constant 0 : index
    %c0_11 = arith.constant 0 : index
    %c0_12 = arith.constant 0 : index
    %6 = vector.load %arg2[%c0_10, %c0_11, %c0_12] : memref<9x1x4xf32, #tpu.memory_space<vmem>>, vector<1x1x4xf32>
    %7 = vector.shape_cast %6 : vector<1x1x4xf32> to vector<1x4xf32>
    %8 = vector.shape_cast %7 : vector<1x4xf32> to vector<1x1x4xf32>
    %9 = vector.broadcast %8 : vector<1x1x4xf32> to vector<16x16x4xf32>
    %10 = arith.mulf %5, %9 : vector<16x16x4xf32>
    %c7_13 = arith.constant 7 : index
    %c8_14 = arith.constant 8 : index
    %c0_15 = arith.constant 0 : index
    %11 = vector.load %arg5[%c7_13, %c8_14, %c0_15] : memref<32x32x4xf32, #tpu.memory_space<vmem>>, vector<16x16x4xf32>
    %c1 = arith.constant 1 : index
    %c0_16 = arith.constant 0 : index
    %c0_17 = arith.constant 0 : index
    %12 = vector.load %arg2[%c1, %c0_16, %c0_17] : memref<9x1x4xf32, #tpu.memory_space<vmem>>, vector<1x1x4xf32>
    %13 = vector.shape_cast %12 : vector<1x1x4xf32> to vector<1x4xf32>
    %14 = vector.shape_cast %13 : vector<1x4xf32> to vector<1x1x4xf32>
    %15 = vector.broadcast %14 : vector<1x1x4xf32> to vector<16x16x4xf32>
    %16 = arith.mulf %11, %15 : vector<16x16x4xf32>
    %17 = arith.addf %10, %16 : vector<16x16x4xf32>
    %c7_18 = arith.constant 7 : index
    %c9 = arith.constant 9 : index
    %c0_19 = arith.constant 0 : index
    %18 = vector.load %arg5[%c7_18, %c9, %c0_19] : memref<32x32x4xf32, #tpu.memory_space<vmem>>, vector<16x16x4xf32>
    %c2 = arith.constant 2 : index
    %c0_20 = arith.constant 0 : index
    %c0_21 = arith.constant 0 : index
    %19 = vector.load %arg2[%c2, %c0_20, %c0_21] : memref<9x1x4xf32, #tpu.memory_space<vmem>>, vector<1x1x4xf32>
    %20 = vector.shape_cast %19 : vector<1x1x4xf32> to vector<1x4xf32>
    %21 = vector.shape_cast %20 : vector<1x4xf32> to vector<1x1x4xf32>
    %22 = vector.broadcast %21 : vector<1x1x4xf32> to vector<16x16x4xf32>
    %23 = arith.mulf %18, %22 : vector<16x16x4xf32>
    %24 = arith.addf %17, %23 : vector<16x16x4xf32>
    %c8_22 = arith.constant 8 : index
    %c7_23 = arith.constant 7 : index
    %c0_24 = arith.constant 0 : index
    %25 = vector.load %arg5[%c8_22, %c7_23, %c0_24] : memref<32x32x4xf32, #tpu.memory_space<vmem>>, vector<16x16x4xf32>
    %c3 = arith.constant 3 : index
    %c0_25 = arith.constant 0 : index
    %c0_26 = arith.constant 0 : index
    %26 = vector.load %arg2[%c3, %c0_25, %c0_26] : memref<9x1x4xf32, #tpu.memory_space<vmem>>, vector<1x1x4xf32>
    %27 = vector.shape_cast %26 : vector<1x1x4xf32> to vector<1x4xf32>
    %28 = vector.shape_cast %27 : vector<1x4xf32> to vector<1x1x4xf32>
    %29 = vector.broadcast %28 : vector<1x1x4xf32> to vector<16x16x4xf32>
    %30 = arith.mulf %25, %29 : vector<16x16x4xf32>
    %31 = arith.addf %24, %30 : vector<16x16x4xf32>
    %c8_27 = arith.constant 8 : index
    %c8_28 = arith.constant 8 : index
    %c0_29 = arith.constant 0 : index
    %32 = vector.load %arg5[%c8_27, %c8_28, %c0_29] : memref<32x32x4xf32, #tpu.memory_space<vmem>>, vector<16x16x4xf32>
    %c4 = arith.constant 4 : index
    %c0_30 = arith.constant 0 : index
    %c0_31 = arith.constant 0 : index
    %33 = vector.load %arg2[%c4, %c0_30, %c0_31] : memref<9x1x4xf32, #tpu.memory_space<vmem>>, vector<1x1x4xf32>
    %34 = vector.shape_cast %33 : vector<1x1x4xf32> to vector<1x4xf32>
    %35 = vector.shape_cast %34 : vector<1x4xf32> to vector<1x1x4xf32>
    %36 = vector.broadcast %35 : vector<1x1x4xf32> to vector<16x16x4xf32>
    %37 = arith.mulf %32, %36 : vector<16x16x4xf32>
    %38 = arith.addf %31, %37 : vector<16x16x4xf32>
    %c8_32 = arith.constant 8 : index
    %c9_33 = arith.constant 9 : index
    %c0_34 = arith.constant 0 : index
    %39 = vector.load %arg5[%c8_32, %c9_33, %c0_34] : memref<32x32x4xf32, #tpu.memory_space<vmem>>, vector<16x16x4xf32>
    %c5 = arith.constant 5 : index
    %c0_35 = arith.constant 0 : index
    %c0_36 = arith.constant 0 : index
    %40 = vector.load %arg2[%c5, %c0_35, %c0_36] : memref<9x1x4xf32, #tpu.memory_space<vmem>>, vector<1x1x4xf32>
    %41 = vector.shape_cast %40 : vector<1x1x4xf32> to vector<1x4xf32>
    %42 = vector.shape_cast %41 : vector<1x4xf32> to vector<1x1x4xf32>
    %43 = vector.broadcast %42 : vector<1x1x4xf32> to vector<16x16x4xf32>
    %44 = arith.mulf %39, %43 : vector<16x16x4xf32>
    %45 = arith.addf %38, %44 : vector<16x16x4xf32>
    %c9_37 = arith.constant 9 : index
    %c7_38 = arith.constant 7 : index
    %c0_39 = arith.constant 0 : index
    %46 = vector.load %arg5[%c9_37, %c7_38, %c0_39] : memref<32x32x4xf32, #tpu.memory_space<vmem>>, vector<16x16x4xf32>
    %c6 = arith.constant 6 : index
    %c0_40 = arith.constant 0 : index
    %c0_41 = arith.constant 0 : index
    %47 = vector.load %arg2[%c6, %c0_40, %c0_41] : memref<9x1x4xf32, #tpu.memory_space<vmem>>, vector<1x1x4xf32>
    %48 = vector.shape_cast %47 : vector<1x1x4xf32> to vector<1x4xf32>
    %49 = vector.shape_cast %48 : vector<1x4xf32> to vector<1x1x4xf32>
    %50 = vector.broadcast %49 : vector<1x1x4xf32> to vector<16x16x4xf32>
    %51 = arith.mulf %46, %50 : vector<16x16x4xf32>
    %52 = arith.addf %45, %51 : vector<16x16x4xf32>
    %c9_42 = arith.constant 9 : index
    %c8_43 = arith.constant 8 : index
    %c0_44 = arith.constant 0 : index
    %53 = vector.load %arg5[%c9_42, %c8_43, %c0_44] : memref<32x32x4xf32, #tpu.memory_space<vmem>>, vector<16x16x4xf32>
    %c7_45 = arith.constant 7 : index
    %c0_46 = arith.constant 0 : index
    %c0_47 = arith.constant 0 : index
    %54 = vector.load %arg2[%c7_45, %c0_46, %c0_47] : memref<9x1x4xf32, #tpu.memory_space<vmem>>, vector<1x1x4xf32>
    %55 = vector.shape_cast %54 : vector<1x1x4xf32> to vector<1x4xf32>
    %56 = vector.shape_cast %55 : vector<1x4xf32> to vector<1x1x4xf32>
    %57 = vector.broadcast %56 : vector<1x1x4xf32> to vector<16x16x4xf32>
    %58 = arith.mulf %53, %57 : vector<16x16x4xf32>
    %59 = arith.addf %52, %58 : vector<16x16x4xf32>
    %c9_48 = arith.constant 9 : index
    %c9_49 = arith.constant 9 : index
    %c0_50 = arith.constant 0 : index
    %60 = vector.load %arg5[%c9_48, %c9_49, %c0_50] : memref<32x32x4xf32, #tpu.memory_space<vmem>>, vector<16x16x4xf32>
    %c8_51 = arith.constant 8 : index
    %c0_52 = arith.constant 0 : index
    %c0_53 = arith.constant 0 : index
    %61 = vector.load %arg2[%c8_51, %c0_52, %c0_53] : memref<9x1x4xf32, #tpu.memory_space<vmem>>, vector<1x1x4xf32>
    %62 = vector.shape_cast %61 : vector<1x1x4xf32> to vector<1x4xf32>
    %63 = vector.shape_cast %62 : vector<1x4xf32> to vector<1x1x4xf32>
    %64 = vector.broadcast %63 : vector<1x1x4xf32> to vector<16x16x4xf32>
    %65 = arith.mulf %60, %64 : vector<16x16x4xf32>
    %66 = arith.addf %59, %65 : vector<16x16x4xf32>
    %cst_54 = arith.constant dense<0.000000e+00> : vector<16x16xf32>
    %67 = vector.multi_reduction <add>, %66, %cst_54 [2] : vector<16x16x4xf32> to vector<16x16xf32>
    %68 = vector.shape_cast %67 : vector<16x16xf32> to vector<16x16x1xf32>
    %c0_55 = arith.constant 0 : index
    %c0_56 = arith.constant 0 : index
    %69 = vector.load %arg3[%c0_55, %c0_56] : memref<2x1xf32, #tpu.memory_space<vmem>>, vector<1x1xf32>
    %70 = vector.shape_cast %69 : vector<1x1xf32> to vector<1x1x1xf32>
    %71 = vector.broadcast %70 : vector<1x1x1xf32> to vector<16x16x1xf32>
    %72 = arith.mulf %68, %71 : vector<16x16x1xf32>
    %c1_57 = arith.constant 1 : index
    %c0_58 = arith.constant 0 : index
    %73 = vector.load %arg3[%c1_57, %c0_58] : memref<2x1xf32, #tpu.memory_space<vmem>>, vector<1x1xf32>
    %74 = vector.shape_cast %73 : vector<1x1xf32> to vector<1x1x1xf32>
    %75 = vector.broadcast %74 : vector<1x1x1xf32> to vector<16x16x1xf32>
    %76 = arith.addf %72, %75 : vector<16x16x1xf32>
    %cst_59 = arith.constant 0.000000e+00 : f32
    %77 = vector.broadcast %cst_59 : f32 to vector<16x16x1xf32>
    %78 = arith.cmpf oge, %76, %77 : vector<16x16x1xf32>
    %cst_60 = arith.constant 0.00999999977 : f32
    %79 = vector.broadcast %cst_60 : f32 to vector<16x16x1xf32>
    %80 = arith.mulf %79, %76 : vector<16x16x1xf32>
    %81 = arith.select %78, %76, %80 : vector<16x16x1xi1>, vector<16x16x1xf32>
    %c0_61 = arith.constant 0 : index
    %c0_62 = arith.constant 0 : index
    %c0_63 = arith.constant 0 : index
    %c0_64 = arith.constant 0 : index
    %82 = vector.load %arg4[%c0_61, %c0_62, %c0_63, %c0_64] : memref<1x16x16x1xf32, #tpu.memory_space<vmem>>, vector<1x16x16x1xf32>
    %83 = vector.shape_cast %82 : vector<1x16x16x1xf32> to vector<16x16x1xf32>
    %84 = vector.shape_cast %81 : vector<16x16x1xf32> to vector<1x16x16x1xf32>
    tpu.vector_store %arg4[%c0_61, %c0_62, %c0_63, %c0_64], %84 {strides = array<i32>} : memref<1x16x16x1xf32, #tpu.memory_space<vmem>>, vector<1x16x16x1xf32>,
    return
  }
  func.func @transform_0(%arg0: i32) -> (i32, i32, i32, i32) {
    %c0_i32 = arith.constant 0 : i32
    %c0_i32_0 = arith.constant 0 : i32
    %c0_i32_1 = arith.constant 0 : i32
    %c0_i32_2 = arith.constant 0 : i32
    return %arg0, %c0_i32, %c0_i32_0, %c0_i32_1 : i32, i32, i32, i32
  }
  func.func @transform_1(%arg0: i32) -> (i32, i32, i32) {
    %c0_i32 = arith.constant 0 : i32
    %c0_i32_0 = arith.constant 0 : i32
    %c0_i32_1 = arith.constant 0 : i32
    %c0_i32_2 = arith.constant 0 : i32
    return %c0_i32, %c0_i32_0, %c0_i32_1 : i32, i32, i32
  }
  func.func @transform_2(%arg0: i32) -> (i32, i32) {
    %c0_i32 = arith.constant 0 : i32
    %c0_i32_0 = arith.constant 0 : i32
    %c0_i32_1 = arith.constant 0 : i32
    return %c0_i32, %c0_i32_0 : i32, i32
  }
  func.func @transform_3(%arg0: i32) -> (i32, i32, i32, i32) {
    %c0_i32 = arith.constant 0 : i32
    %c0_i32_0 = arith.constant 0 : i32
    %c0_i32_1 = arith.constant 0 : i32
    %c0_i32_2 = arith.constant 0 : i32
    return %arg0, %c0_i32, %c0_i32_0, %c0_i32_1 : i32, i32, i32, i32
  }
}

</mosaic_0001>

<llo_original>
// kernel: tpu_custom_call.1
$region0: #{tpu_custom_call.1}
  #allocation0 [shape = 'u32[]', space=smem, size = 0x4, offset = 0x4, fixed_abs, tag = 'smem constant byte address 0x4 - core index']
  #allocation1 [shape = 'u32[144,128]{1,0:T(1,128)}', space=vmem, size = 0x12000, scoped, tag = 'internal scratch']
  #allocation2 [shape = 'f32[32,32,4]{2,1,0:T(8,128)}', space=vmem, size = 0x80000, scoped, tag = 'scratch operand']
  %s0 = inlined_call_operand.vmem [shape: f32[2,16,16,4], index: 0, kind: input, shape index: {}]
  %s1 = inlined_call_operand.vmem [shape: f32[9,1,4], index: 1, kind: input, shape index: {}]
  %s2 = inlined_call_operand.vmem [shape: f32[2,1], index: 2, kind: input, shape index: {}]
  %s3 = inlined_call_operand.vmem [shape: f32[2,16,16,1], index: 3, kind: output, shape index: {}]
  %s4 = sld [smem:[#allocation0]]
  $region45: #{tpu_custom_call.1} parent=0
    _
  %s6 = ssub.s32 1, %s4
  %s7 = scalar_select 0, %s6, %s4
  loop: start=0, step=1, limit=4
  $region2: #{tpu_custom_call.1} parent=0 // loop_pre_header
    _
  $region3: #{tpu_custom_call.1} parent=0 // loop_header
    %s9 = sphi 0, %s13
    %p10 = scmp.ge.s32.totalorder %s9, 4
    %s19 = sphi 0, %s21
    %s22 = sphi 0, %s19
    %s23 = sphi 0, %s22
    %s39 = sphi 0, %s23
    %s43 = sphi 0, %s43
    %s45 = sphi 0, %s43
    %s46 = sphi 0, %s45
    %s60 = sphi 0, %s46
    %s64 = sphi 0, %s64
    %s66 = sphi 0, %s64
    %s67 = sphi 0, %s66
    %s81 = sphi 0, %s67
    %s87 = sphi 0, %s89
    %s90 = sphi 0, %s87
    %s91 = sphi 0, %s90
    %s107 = sphi 0, %s91
  $region4: #{tpu_custom_call.1} parent=0 // loop_header_branch
    %12 = sbr.rel (%p10) target = $region8
  $region5: #{tpu_custom_call.1} parent=0 // loop_body
    %s14 = ssub.s32 %s9, 1
    %s15 = ssub.s32 %s9, 2
    %s16 = sadd.s32 %s9, 1
    %s17 = ssub.s32 %s9, %s16
    %p18 = scmp.eq.s32.totalorder %s17, 0
    %s20 = sadd.s32 %s19, 1
    %s21 = scalar_select %p18, %s19, %s20
    %p24 = pneg %p18
    %p25 = scmp.eq.s32.totalorder %s9, 1
    %p26 = por %p24, %p25
    %p27 = scmp.ne.s32.totalorder %s19, %s22
    %p28 = scmp.eq.s32.totalorder %s9, 0
    %p29 = por %p27, %p28
    %p30 = scmp.ne.s32.totalorder %s19, %s22
    %p31 = scmp.eq.s32.totalorder %s14, 1
    %p32 = por %p30, %p31
    %p33 = scmp.ne.s32.totalorder %s22, %s23
    %p34 = scmp.eq.s32.totalorder %s14, 0
    %p35 = por %p33, %p34
    %p36 = scmp.ne.s32.totalorder %s22, %s23
    %p37 = scmp.eq.s32.totalorder %s15, 1
    %p38 = por %p36, %p37
    %p40 = scmp.ne.s32.totalorder %s23, %s39
    %p41 = scmp.eq.s32.totalorder %s15, 0
    %p42 = por %p40, %p41
    %s44 = sadd.s32 %s43, 1
    %p47 = scmp.eq.s32.totalorder %s9, 1
    %p48 = scmp.ne.s32.totalorder %s43, %s45
    %p49 = scmp.eq.s32.totalorder %s9, 0
    %p50 = por %p48, %p49
    %p51 = scmp.ne.s32.totalorder %s43, %s45
    %p52 = scmp.eq.s32.totalorder %s14, 1
    %p53 = por %p51, %p52
    %p54 = scmp.ne.s32.totalorder %s45, %s46
    %p55 = scmp.eq.s32.totalorder %s14, 0
    %p56 = por %p54, %p55
    %p57 = scmp.ne.s32.totalorder %s45, %s46
    %p58 = scmp.eq.s32.totalorder %s15, 1
    %p59 = por %p57, %p58
    %p61 = scmp.ne.s32.totalorder %s46, %s60
    %p62 = scmp.eq.s32.totalorder %s15, 0
    %p63 = por %p61, %p62
    %s65 = sadd.s32 %s64, 1
    %p68 = scmp.eq.s32.totalorder %s9, 1
    %p69 = scmp.ne.s32.totalorder %s64, %s66
    %p70 = scmp.eq.s32.totalorder %s9, 0
    %p71 = por %p69, %p70
    %p72 = scmp.ne.s32.totalorder %s64, %s66
    %p73 = scmp.eq.s32.totalorder %s14, 1
    %p74 = por %p72, %p73
    %p75 = scmp.ne.s32.totalorder %s66, %s67
    %p76 = scmp.eq.s32.totalorder %s14, 0
    %p77 = por %p75, %p76
    %p78 = scmp.ne.s32.totalorder %s66, %s67
    %p79 = scmp.eq.s32.totalorder %s15, 1
    %p80 = por %p78, %p79
    %p82 = scmp.ne.s32.totalorder %s67, %s81
    %p83 = scmp.eq.s32.totalorder %s15, 0
    %p84 = por %p82, %p83
    %s85 = ssub.s32 %s9, %s16
    %p86 = scmp.eq.s32.totalorder %s85, 0
    %s88 = sadd.s32 %s87, 1
    %s89 = scalar_select %p86, %s87, %s88
    %p92 = pneg %p86
    %p93 = scmp.eq.s32.totalorder %s9, 1
    %p94 = por %p92, %p93
    %p95 = scmp.ne.s32.totalorder %s87, %s90
    %p96 = scmp.eq.s32.totalorder %s9, 0
    %p97 = por %p95, %p96
    %p98 = scmp.ne.s32.totalorder %s87, %s90
    %p99 = scmp.eq.s32.totalorder %s14, 1
    %p100 = por %p98, %p99
    %p101 = scmp.ne.s32.totalorder %s90, %s91
    %p102 = scmp.eq.s32.totalorder %s14, 0
    %p103 = por %p101, %p102
    %p104 = scmp.ne.s32.totalorder %s90, %s91
    %p105 = scmp.eq.s32.totalorder %s15, 1
    %p106 = por %p104, %p105
    %p108 = scmp.ne.s32.totalorder %s91, %s107
    %p109 = scmp.eq.s32.totalorder %s15, 0
    %p110 = por %p108, %p109
    %p111 = scmp.le.s32.totalorder 1, %s9
    %p112 = scmp.lt.s32.totalorder %s9, 3
    %p113 = pnand %p111, %p112
    %p114 = pneg %p113
    // Predicated region
    $region9: #{tpu_custom_call.1} parent=5 // pred_check
      _
    $region10: #{tpu_custom_call.1} parent=5 // pred_check_branch
      %116 = sbr.rel (%p113) target = $region12
    $region11: #{tpu_custom_call.1} parent=5 // pred_region
      %s117 = ssub.s32 %s9, 1
      // Predicated region
      $region13: #{tpu_custom_call.1} parent=11 // pred_check
        %p118 = pneg %p56
      $region14: #{tpu_custom_call.1} parent=11 // pred_check_branch
        %120 = sbr.rel (%p118) target = $region16
      $region15: #{tpu_custom_call.1} parent=11 // pred_region
        _
      $region16: #{tpu_custom_call.1} parent=11 // pred_fallthru
        _
      // Predicated region
      $region17: #{tpu_custom_call.1} parent=11 // pred_check
        %p121 = pneg %p77
      $region18: #{tpu_custom_call.1} parent=11 // pred_check_branch
        %123 = sbr.rel (%p121) target = $region20
      $region19: #{tpu_custom_call.1} parent=11 // pred_region
        _
      $region20: #{tpu_custom_call.1} parent=11 // pred_fallthru
        _
    $region12: #{tpu_custom_call.1} parent=5 // pred_fallthru
      _
    %p124 = scmp.lt.s32.totalorder %s9, 2
    // Predicated region
    $region21: #{tpu_custom_call.1} parent=5 // pred_check
      %p125 = pneg %p124
    $region22: #{tpu_custom_call.1} parent=5 // pred_check_branch
      %127 = sbr.rel (%p125) target = $region24
    $region23: #{tpu_custom_call.1} parent=5 // pred_region
      // Predicated region
      $region25: #{tpu_custom_call.1} parent=23 // pred_check
        %p128 = pneg %p29
      $region26: #{tpu_custom_call.1} parent=23 // pred_check_branch
        %130 = sbr.rel (%p128) target = $region28
      $region27: #{tpu_custom_call.1} parent=23 // pred_region
        %p131 = scmp.lt.s32.totalorder %s9, 1
        %s132 = scalar_select %p131, %s9, 1
        %s133 = smul.addr %s132, 32
        %s134 = smul.addr %s133, 8
        %s135 = scalar_lea.vmem %s0, %s134
      $region28: #{tpu_custom_call.1} parent=23 // pred_fallthru
        _
    $region24: #{tpu_custom_call.1} parent=5 // pred_fallthru
      _
    %p136 = scmp.le.s32.totalorder 1, %s9
    %p137 = scmp.lt.s32.totalorder %s9, 3
    %p138 = pnand %p136, %p137
    %p139 = pneg %p138
    // Predicated region
    $region29: #{tpu_custom_call.1} parent=5 // pred_check
      _
    $region30: #{tpu_custom_call.1} parent=5 // pred_check_branch
      %141 = sbr.rel (%p138) target = $region32
    $region31: #{tpu_custom_call.1} parent=5 // pred_region
      %s142 = ssub.s32 %s9, 1
      %p143 = scmp.lt.s32.totalorder %s14, 1
      %s144 = scalar_select %p143, %s14, 1
      %s145 = smul.addr %s144, 32
      %s146 = smul.addr %s145, 8
      %s147 = scalar_lea.vmem %s0, %s146
      %p148 = pneg %p35
      %p149 = pneg %p32
      %p150 = pneg %p56
      %p151 = pneg %p53
      %p152 = pneg %p77
      %p153 = pneg %p74
      %p154 = pneg %p103
      %p155 = pneg %p100
      %p156 = scmp.lt.s32.totalorder %s14, 1
      %s157 = scalar_select %p156, %s14, 1
      %s158 = smul.addr %s157, 32
      %s159 = smul.addr %s158, 8
      %s160 = scalar_lea.vmem %s3, %s159
      %p161 = scmp.lt.s32.totalorder %s14, 1
      %s162 = scalar_select %p161, %s14, 1
      %s163 = smul.addr %s162, 32
      %s164 = smul.addr %s163, 8
      %s165 = scalar_lea.vmem %s0, %s164
      %p166 = scmp.lt.s32.totalorder %s14, 1
      %s167 = scalar_select %p166, %s14, 1
      %s168 = smul.addr %s167, 32
      %s169 = smul.addr %s168, 8
      %s170 = scalar_lea.vmem %s3, %s169
      %v171 = vld [vmem:[%s165] sm:$0xff]
      %v172 = vld [vmem:[%s165 + $0x8] sm:$0xff]
      %v173 = vld [vmem:[%s165 + $0x10] sm:$0xff]
      %v174 = vld [vmem:[%s165 + $0x18] sm:$0xff]
      %v175 = vld [vmem:[%s165 + $0x20] sm:$0xff]
      %v176 = vld [vmem:[%s165 + $0x28] sm:$0xff]
      %v177 = vld [vmem:[%s165 + $0x30] sm:$0xff]
      %v178 = vld [vmem:[%s165 + $0x38] sm:$0xff]
      %v179 = vld [vmem:[%s165 + $0x40] sm:$0xff]
      %v180 = vld [vmem:[%s165 + $0x48] sm:$0xff]
      %v181 = vld [vmem:[%s165 + $0x50] sm:$0xff]
      %v182 = vld [vmem:[%s165 + $0x58] sm:$0xff]
      %v183 = vld [vmem:[%s165 + $0x60] sm:$0xff]
      %v184 = vld [vmem:[%s165 + $0x68] sm:$0xff]
      %v185 = vld [vmem:[%s165 + $0x70] sm:$0xff]
      %v186 = vld [vmem:[%s165 + $0x78] sm:$0xff]
      %v187 = vld [vmem:[%s165 + $0x80] sm:$0xff]
      %v188 = vld [vmem:[%s165 + $0x88] sm:$0xff]
      %v189 = vld [vmem:[%s165 + $0x90] sm:$0xff]
      %v190 = vld [vmem:[%s165 + $0x98] sm:$0xff]
      %v191 = vld [vmem:[%s165 + $0xa0] sm:$0xff]
      %v192 = vld [vmem:[%s165 + $0xa8] sm:$0xff]
      %v193 = vld [vmem:[%s165 + $0xb0] sm:$0xff]
      %v194 = vld [vmem:[%s165 + $0xb8] sm:$0xff]
      %v195 = vld [vmem:[%s165 + $0xc0] sm:$0xff]
      %v196 = vld [vmem:[%s165 + $0xc8] sm:$0xff]
      %v197 = vld [vmem:[%s165 + $0xd0] sm:$0xff]
      %v198 = vld [vmem:[%s165 + $0xd8] sm:$0xff]
      %v199 = vld [vmem:[%s165 + $0xe0] sm:$0xff]
      %v200 = vld [vmem:[%s165 + $0xe8] sm:$0xff]
      %v201 = vld [vmem:[%s165 + $0xf0] sm:$0xff]
      %v202 = vld [vmem:[%s165 + $0xf8] sm:$0xff]
      %vm203 = vcmask 31744
      %204 = vst.msk [vmem:[#allocation2] sm:$0xff] %vm203, 0.0
      %205 = vst.msk [vmem:[#allocation2 + $0x8] sm:$0xff] %vm203, 0.0
      %206 = vst.msk [vmem:[#allocation2 + $0x10] sm:$0xff] %vm203, 0.0
      %207 = vst.msk [vmem:[#allocation2 + $0x18] sm:$0xff] %vm203, 0.0
      %208 = vst.msk [vmem:[#allocation2 + $0x20] sm:$0xff] %vm203, 0.0
      %209 = vst.msk [vmem:[#allocation2 + $0x28] sm:$0xff] %vm203, 0.0
      %210 = vst.msk [vmem:[#allocation2 + $0x30] sm:$0xff] %vm203, 0.0
      %211 = vst.msk [vmem:[#allocation2 + $0x38] sm:$0xff] %vm203, 0.0
      %212 = vst.msk [vmem:[#allocation2 + $0x40] sm:$0xff] %vm203, 0.0
      %213 = vst.msk [vmem:[#allocation2 + $0x48] sm:$0xff] %vm203, 0.0
      %214 = vst.msk [vmem:[#allocation2 + $0x50] sm:$0xff] %vm203, 0.0
      %215 = vst.msk [vmem:[#allocation2 + $0x58] sm:$0xff] %vm203, 0.0
      %216 = vst.msk [vmem:[#allocation2 + $0x60] sm:$0xff] %vm203, 0.0
      %217 = vst.msk [vmem:[#allocation2 + $0x68] sm:$0xff] %vm203, 0.0
      %218 = vst.msk [vmem:[#allocation2 + $0x70] sm:$0xff] %vm203, 0.0
      %219 = vst.msk [vmem:[#allocation2 + $0x78] sm:$0xff] %vm203, 0.0
      %220 = vst.msk [vmem:[#allocation2 + $0x80] sm:$0xff] %vm203, 0.0
      %221 = vst.msk [vmem:[#allocation2 + $0x88] sm:$0xff] %vm203, 0.0
      %222 = vst.msk [vmem:[#allocation2 + $0x90] sm:$0xff] %vm203, 0.0
      %223 = vst.msk [vmem:[#allocation2 + $0x98] sm:$0xff] %vm203, 0.0
      %224 = vst.msk [vmem:[#allocation2 + $0xa0] sm:$0xff] %vm203, 0.0
      %225 = vst.msk [vmem:[#allocation2 + $0xa8] sm:$0xff] %vm203, 0.0
      %226 = vst.msk [vmem:[#allocation2 + $0xb0] sm:$0xff] %vm203, 0.0
      %227 = vst.msk [vmem:[#allocation2 + $0xb8] sm:$0xff] %vm203, 0.0
      %228 = vst.msk [vmem:[#allocation2 + $0xc0] sm:$0xff] %vm203, 0.0
      %229 = vst.msk [vmem:[#allocation2 + $0xc8] sm:$0xff] %vm203, 0.0
      %230 = vst.msk [vmem:[#allocation2 + $0xd0] sm:$0xff] %vm203, 0.0
      %231 = vst.msk [vmem:[#allocation2 + $0xd8] sm:$0xff] %vm203, 0.0
      %232 = vst.msk [vmem:[#allocation2 + $0xe0] sm:$0xff] %vm203, 0.0
      %233 = vst.msk [vmem:[#allocation2 + $0xe8] sm:$0xff] %vm203, 0.0
      %234 = vst.msk [vmem:[#allocation2 + $0xf0] sm:$0xff] %vm203, 0.0
      %235 = vst.msk [vmem:[#allocation2 + $0xf8] sm:$0xff] %vm203, 0.0
      %236 = vst.msk [vmem:[#allocation2 + $0x100] sm:$0xff] %vm203, 0.0
      %237 = vst.msk [vmem:[#allocation2 + $0x108] sm:$0xff] %vm203, 0.0
      %238 = vst.msk [vmem:[#allocation2 + $0x110] sm:$0xff] %vm203, 0.0
      %239 = vst.msk [vmem:[#allocation2 + $0x118] sm:$0xff] %vm203, 0.0
      %240 = vst.msk [vmem:[#allocation2 + $0x120] sm:$0xff] %vm203, 0.0
      %241 = vst.msk [vmem:[#allocation2 + $0x128] sm:$0xff] %vm203, 0.0
      %242 = vst.msk [vmem:[#allocation2 + $0x130] sm:$0xff] %vm203, 0.0
      %243 = vst.msk [vmem:[#allocation2 + $0x138] sm:$0xff] %vm203, 0.0
      %244 = vst.msk [vmem:[#allocation2 + $0x140] sm:$0xff] %vm203, 0.0
      %245 = vst.msk [vmem:[#allocation2 + $0x148] sm:$0xff] %vm203, 0.0
      %246 = vst.msk [vmem:[#allocation2 + $0x150] sm:$0xff] %vm203, 0.0
      %247 = vst.msk [vmem:[#allocation2 + $0x158] sm:$0xff] %vm203, 0.0
      %248 = vst.msk [vmem:[#allocation2 + $0x160] sm:$0xff] %vm203, 0.0
      %249 = vst.msk [vmem:[#allocation2 + $0x168] sm:$0xff] %vm203, 0.0
      %250 = vst.msk [vmem:[#allocation2 + $0x170] sm:$0xff] %vm203, 0.0
      %251 = vst.msk [vmem:[#allocation2 + $0x178] sm:$0xff] %vm203, 0.0
      %252 = vst.msk [vmem:[#allocation2 + $0x180] sm:$0xff] %vm203, 0.0
      %253 = vst.msk [vmem:[#allocation2 + $0x188] sm:$0xff] %vm203, 0.0
      %254 = vst.msk [vmem:[#allocation2 + $0x190] sm:$0xff] %vm203, 0.0
      %255 = vst.msk [vmem:[#allocation2 + $0x198] sm:$0xff] %vm203, 0.0
      %256 = vst.msk [vmem:[#allocation2 + $0x1a0] sm:$0xff] %vm203, 0.0
      %257 = vst.msk [vmem:[#allocation2 + $0x1a8] sm:$0xff] %vm203, 0.0
      %258 = vst.msk [vmem:[#allocation2 + $0x1b0] sm:$0xff] %vm203, 0.0
      %259 = vst.msk [vmem:[#allocation2 + $0x1b8] sm:$0xff] %vm203, 0.0
      %260 = vst.msk [vmem:[#allocation2 + $0x1c0] sm:$0xff] %vm203, 0.0
      %261 = vst.msk [vmem:[#allocation2 + $0x1c8] sm:$0xff] %vm203, 0.0
      %262 = vst.msk [vmem:[#allocation2 + $0x1d0] sm:$0xff] %vm203, 0.0
      %263 = vst.msk [vmem:[#allocation2 + $0x1d8] sm:$0xff] %vm203, 0.0
      %264 = vst.msk [vmem:[#allocation2 + $0x1e0] sm:$0xff] %vm203, 0.0
      %265 = vst.msk [vmem:[#allocation2 + $0x1e8] sm:$0xff] %vm203, 0.0
      %266 = vst.msk [vmem:[#allocation2 + $0x1f0] sm:$0xff] %vm203, 0.0
      %267 = vst.msk [vmem:[#allocation2 + $0x1f8] sm:$0xff] %vm203, 0.0
      %268 = vst.msk [vmem:[#allocation2 + $0x200] sm:$0xff] %vm203, 0.0
      %269 = vst.msk [vmem:[#allocation2 + $0x208] sm:$0xff] %vm203, 0.0
      %270 = vst.msk [vmem:[#allocation2 + $0x210] sm:$0xff] %vm203, 0.0
      %271 = vst.msk [vmem:[#allocation2 + $0x218] sm:$0xff] %vm203, 0.0
      %272 = vst.msk [vmem:[#allocation2 + $0x220] sm:$0xff] %vm203, 0.0
      %273 = vst.msk [vmem:[#allocation2 + $0x228] sm:$0xff] %vm203, 0.0
      %274 = vst.msk [vmem:[#allocation2 + $0x230] sm:$0xff] %vm203, 0.0
      %275 = vst.msk [vmem:[#allocation2 + $0x238] sm:$0xff] %vm203, 0.0
      %276 = vst.msk [vmem:[#allocation2 + $0x240] sm:$0xff] %vm203, 0.0
      %277 = vst.msk [vmem:[#allocation2 + $0x248] sm:$0xff] %vm203, 0.0
      %278 = vst.msk [vmem:[#allocation2 + $0x250] sm:$0xff] %vm203, 0.0
      %279 = vst.msk [vmem:[#allocation2 + $0x258] sm:$0xff] %vm203, 0.0
      %280 = vst.msk [vmem:[#allocation2 + $0x260] sm:$0xff] %vm203, 0.0
      %281 = vst.msk [vmem:[#allocation2 + $0x268] sm:$0xff] %vm203, 0.0
      %282 = vst.msk [vmem:[#allocation2 + $0x270] sm:$0xff] %vm203, 0.0
      %283 = vst.msk [vmem:[#allocation2 + $0x278] sm:$0xff] %vm203, 0.0
      %284 = vst.msk [vmem:[#allocation2 + $0x280] sm:$0xff] %vm203, 0.0
      %285 = vst.msk [vmem:[#allocation2 + $0x288] sm:$0xff] %vm203, 0.0
      %286 = vst.msk [vmem:[#allocation2 + $0x290] sm:$0xff] %vm203, 0.0
      %287 = vst.msk [vmem:[#allocation2 + $0x298] sm:$0xff] %vm203, 0.0
      %288 = vst.msk [vmem:[#allocation2 + $0x2a0] sm:$0xff] %vm203, 0.0
      %289 = vst.msk [vmem:[#allocation2 + $0x2a8] sm:$0xff] %vm203, 0.0
      %290 = vst.msk [vmem:[#allocation2 + $0x2b0] sm:$0xff] %vm203, 0.0
      %291 = vst.msk [vmem:[#allocation2 + $0x2b8] sm:$0xff] %vm203, 0.0
      %292 = vst.msk [vmem:[#allocation2 + $0x2c0] sm:$0xff] %vm203, 0.0
      %293 = vst.msk [vmem:[#allocation2 + $0x2c8] sm:$0xff] %vm203, 0.0
      %294 = vst.msk [vmem:[#allocation2 + $0x2d0] sm:$0xff] %vm203, 0.0
      %295 = vst.msk [vmem:[#allocation2 + $0x2d8] sm:$0xff] %vm203, 0.0
      %296 = vst.msk [vmem:[#allocation2 + $0x2e0] sm:$0xff] %vm203, 0.0
      %297 = vst.msk [vmem:[#allocation2 + $0x2e8] sm:$0xff] %vm203, 0.0
      %298 = vst.msk [vmem:[#allocation2 + $0x2f0] sm:$0xff] %vm203, 0.0
      %299 = vst.msk [vmem:[#allocation2 + $0x2f8] sm:$0xff] %vm203, 0.0
      %300 = vst.msk [vmem:[#allocation2 + $0x300] sm:$0xff] %vm203, 0.0
      %301 = vst.msk [vmem:[#allocation2 + $0x308] sm:$0xff] %vm203, 0.0
      %302 = vst.msk [vmem:[#allocation2 + $0x310] sm:$0xff] %vm203, 0.0
      %303 = vst.msk [vmem:[#allocation2 + $0x318] sm:$0xff] %vm203, 0.0
      %304 = vst.msk [vmem:[#allocation2 + $0x320] sm:$0xff] %vm203, 0.0
      %305 = vst.msk [vmem:[#allocation2 + $0x328] sm:$0xff] %vm203, 0.0
      %306 = vst.msk [vmem:[#allocation2 + $0x330] sm:$0xff] %vm203, 0.0
      %307 = vst.msk [vmem:[#allocation2 + $0x338] sm:$0xff] %vm203, 0.0
      %308 = vst.msk [vmem:[#allocation2 + $0x340] sm:$0xff] %vm203, 0.0
      %309 = vst.msk [vmem:[#allocation2 + $0x348] sm:$0xff] %vm203, 0.0
      %310 = vst.msk [vmem:[#allocation2 + $0x350] sm:$0xff] %vm203, 0.0
      %311 = vst.msk [vmem:[#allocation2 + $0x358] sm:$0xff] %vm203, 0.0
      %312 = vst.msk [vmem:[#allocation2 + $0x360] sm:$0xff] %vm203, 0.0
      %313 = vst.msk [vmem:[#allocation2 + $0x368] sm:$0xff] %vm203, 0.0
      %314 = vst.msk [vmem:[#allocation2 + $0x370] sm:$0xff] %vm203, 0.0
      %315 = vst.msk [vmem:[#allocation2 + $0x378] sm:$0xff] %vm203, 0.0
      %316 = vst.msk [vmem:[#allocation2 + $0x380] sm:$0xff] %vm203, 0.0
      %317 = vst.msk [vmem:[#allocation2 + $0x388] sm:$0xff] %vm203, 0.0
      %318 = vst.msk [vmem:[#allocation2 + $0x390] sm:$0xff] %vm203, 0.0
      %319 = vst.msk [vmem:[#allocation2 + $0x398] sm:$0xff] %vm203, 0.0
      %320 = vst.msk [vmem:[#allocation2 + $0x3a0] sm:$0xff] %vm203, 0.0
      %321 = vst.msk [vmem:[#allocation2 + $0x3a8] sm:$0xff] %vm203, 0.0
      %322 = vst.msk [vmem:[#allocation2 + $0x3b0] sm:$0xff] %vm203, 0.0
      %323 = vst.msk [vmem:[#allocation2 + $0x3b8] sm:$0xff] %vm203, 0.0
      %324 = vst.msk [vmem:[#allocation2 + $0x3c0] sm:$0xff] %vm203, 0.0
      %325 = vst.msk [vmem:[#allocation2 + $0x3c8] sm:$0xff] %vm203, 0.0
      %326 = vst.msk [vmem:[#allocation2 + $0x3d0] sm:$0xff] %vm203, 0.0
      %327 = vst.msk [vmem:[#allocation2 + $0x3d8] sm:$0xff] %vm203, 0.0
      %328 = vst.msk [vmem:[#allocation2 + $0x3e0] sm:$0xff] %vm203, 0.0
      %329 = vst.msk [vmem:[#allocation2 + $0x3e8] sm:$0xff] %vm203, 0.0
      %330 = vst.msk [vmem:[#allocation2 + $0x3f0] sm:$0xff] %vm203, 0.0
      %331 = vst.msk [vmem:[#allocation2 + $0x3f8] sm:$0xff] %vm203, 0.0
      %s332 = scalar_lea.vmem [#allocation2], 256
      %333 = vst.msk [vmem:[%s332 + $0x8] sm:$0xff] %vm203, %v171
      %334 = vst.msk [vmem:[%s332 + $0x10] sm:$0xff] %vm203, %v172
      %335 = vst.msk [vmem:[%s332 + $0x28] sm:$0xff] %vm203, %v173
      %336 = vst.msk [vmem:[%s332 + $0x30] sm:$0xff] %vm203, %v174
      %337 = vst.msk [vmem:[%s332 + $0x48] sm:$0xff] %vm203, %v175
      %338 = vst.msk [vmem:[%s332 + $0x50] sm:$0xff] %vm203, %v176
      %339 = vst.msk [vmem:[%s332 + $0x68] sm:$0xff] %vm203, %v177
      %340 = vst.msk [vmem:[%s332 + $0x70] sm:$0xff] %vm203, %v178
      %341 = vst.msk [vmem:[%s332 + $0x88] sm:$0xff] %vm203, %v179
      %342 = vst.msk [vmem:[%s332 + $0x90] sm:$0xff] %vm203, %v180
      %343 = vst.msk [vmem:[%s332 + $0xa8] sm:$0xff] %vm203, %v181
      %344 = vst.msk [vmem:[%s332 + $0xb0] sm:$0xff] %vm203, %v182
      %345 = vst.msk [vmem:[%s332 + $0xc8] sm:$0xff] %vm203, %v183
      %346 = vst.msk [vmem:[%s332 + $0xd0] sm:$0xff] %vm203, %v184
      %347 = vst.msk [vmem:[%s332 + $0xe8] sm:$0xff] %vm203, %v185
      %348 = vst.msk [vmem:[%s332 + $0xf0] sm:$0xff] %vm203, %v186
      %349 = vst.msk [vmem:[%s332 + $0x108] sm:$0xff] %vm203, %v187
      %350 = vst.msk [vmem:[%s332 + $0x110] sm:$0xff] %vm203, %v188
      %351 = vst.msk [vmem:[%s332 + $0x128] sm:$0xff] %vm203, %v189
      %352 = vst.msk [vmem:[%s332 + $0x130] sm:$0xff] %vm203, %v190
      %353 = vst.msk [vmem:[%s332 + $0x148] sm:$0xff] %vm203, %v191
      %354 = vst.msk [vmem:[%s332 + $0x150] sm:$0xff] %vm203, %v192
      %355 = vst.msk [vmem:[%s332 + $0x168] sm:$0xff] %vm203, %v193
      %356 = vst.msk [vmem:[%s332 + $0x170] sm:$0xff] %vm203, %v194
      %357 = vst.msk [vmem:[%s332 + $0x188] sm:$0xff] %vm203, %v195
      %358 = vst.msk [vmem:[%s332 + $0x190] sm:$0xff] %vm203, %v196
      %359 = vst.msk [vmem:[%s332 + $0x1a8] sm:$0xff] %vm203, %v197
      %360 = vst.msk [vmem:[%s332 + $0x1b0] sm:$0xff] %vm203, %v198
      %361 = vst.msk [vmem:[%s332 + $0x1c8] sm:$0xff] %vm203, %v199
      %362 = vst.msk [vmem:[%s332 + $0x1d0] sm:$0xff] %vm203, %v200
      %363 = vst.msk [vmem:[%s332 + $0x1e8] sm:$0xff] %vm203, %v201
      %364 = vst.msk [vmem:[%s332 + $0x1f0] sm:$0xff] %vm203, %v202
      %s365 = scalar_lea.vmem [#allocation2], 224
      %v366 = vld [vmem:[%s365 + $0x7] sm:$0xff]
      %v367 = vld [vmem:[%s365 + $0xf] sm:$0xff]
      %v368 = vld [vmem:[%s365 + $0x27] sm:$0xff]
      %v369 = vld [vmem:[%s365 + $0x2f] sm:$0xff]
      %v370 = vld [vmem:[%s365 + $0x47] sm:$0xff]
      %v371 = vld [vmem:[%s365 + $0x4f] sm:$0xff]
      %v372 = vld [vmem:[%s365 + $0x67] sm:$0xff]
      %v373 = vld [vmem:[%s365 + $0x6f] sm:$0xff]
      %v374 = vld [vmem:[%s365 + $0x87] sm:$0xff]
      %v375 = vld [vmem:[%s365 + $0x8f] sm:$0xff]
      %v376 = vld [vmem:[%s365 + $0xa7] sm:$0xff]
      %v377 = vld [vmem:[%s365 + $0xaf] sm:$0xff]
      %v378 = vld [vmem:[%s365 + $0xc7] sm:$0xff]
      %v379 = vld [vmem:[%s365 + $0xcf] sm:$0xff]
      %v380 = vld [vmem:[%s365 + $0xe7] sm:$0xff]
      %v381 = vld [vmem:[%s365 + $0xef] sm:$0xff]
      %v382 = vld [vmem:[%s365 + $0x107] sm:$0xff]
      %v383 = vld [vmem:[%s365 + $0x10f] sm:$0xff]
      %v384 = vld [vmem:[%s365 + $0x127] sm:$0xff]
      %v385 = vld [vmem:[%s365 + $0x12f] sm:$0xff]
      %v386 = vld [vmem:[%s365 + $0x147] sm:$0xff]
      %v387 = vld [vmem:[%s365 + $0x14f] sm:$0xff]
      %v388 = vld [vmem:[%s365 + $0x167] sm:$0xff]
      %v389 = vld [vmem:[%s365 + $0x16f] sm:$0xff]
      %v390 = vld [vmem:[%s365 + $0x187] sm:$0xff]
      %v391 = vld [vmem:[%s365 + $0x18f] sm:$0xff]
      %v392 = vld [vmem:[%s365 + $0x1a7] sm:$0xff]
      %v393 = vld [vmem:[%s365 + $0x1af] sm:$0xff]
      %v394 = vld [vmem:[%s365 + $0x1c7] sm:$0xff]
      %v395 = vld [vmem:[%s365 + $0x1cf] sm:$0xff]
      %v396 = vld [vmem:[%s365 + $0x1e7] sm:$0xff]
      %v397 = vld [vmem:[%s365 + $0x1ef] sm:$0xff]
      %v398 = vld [vmem:[%s1] sm:$0x1]
      %v400 = vlaneseq
      %v401 = vshrl.u32 %v400, 7
      %v402 = vsub.s32 0, %v401
      %v403 = vrot.slane %v398, %v402
      %v405 = vmul.f32 %v366, %v403
      %v406 = vmul.f32 %v367, %v403
      %v407 = vmul.f32 %v368, %v403
      %v408 = vmul.f32 %v369, %v403
      %v409 = vmul.f32 %v370, %v403
      %v410 = vmul.f32 %v371, %v403
      %v411 = vmul.f32 %v372, %v403
      %v412 = vmul.f32 %v373, %v403
      %v413 = vmul.f32 %v374, %v403
      %v414 = vmul.f32 %v375, %v403
      %v415 = vmul.f32 %v376, %v403
      %v416 = vmul.f32 %v377, %v403
      %v417 = vmul.f32 %v378, %v403
      %v418 = vmul.f32 %v379, %v403
      %v419 = vmul.f32 %v380, %v403
      %v420 = vmul.f32 %v381, %v403
      %v421 = vmul.f32 %v382, %v403
      %v422 = vmul.f32 %v383, %v403
      %v423 = vmul.f32 %v384, %v403
      %v424 = vmul.f32 %v385, %v403
      %v425 = vmul.f32 %v386, %v403
      %v426 = vmul.f32 %v387, %v403
      %v427 = vmul.f32 %v388, %v403
      %v428 = vmul.f32 %v389, %v403
      %v429 = vmul.f32 %v390, %v403
      %v430 = vmul.f32 %v391, %v403
      %v431 = vmul.f32 %v392, %v403
      %v432 = vmul.f32 %v393, %v403
      %v433 = vmul.f32 %v394, %v403
      %v434 = vmul.f32 %v395, %v403
      %v435 = vmul.f32 %v396, %v403
      %v436 = vmul.f32 %v397, %v403
      %v437 = vld [vmem:[%s365 + $0x8] sm:$0xff]
      %v438 = vld [vmem:[%s365 + $0x10] sm:$0xff]
      %v439 = vld [vmem:[%s365 + $0x28] sm:$0xff]
      %v440 = vld [vmem:[%s365 + $0x30] sm:$0xff]
      %v441 = vld [vmem:[%s365 + $0x48] sm:$0xff]
      %v442 = vld [vmem:[%s365 + $0x50] sm:$0xff]
      %v443 = vld [vmem:[%s365 + $0x68] sm:$0xff]
      %v444 = vld [vmem:[%s365 + $0x70] sm:$0xff]
      %v445 = vld [vmem:[%s365 + $0x88] sm:$0xff]
      %v446 = vld [vmem:[%s365 + $0x90] sm:$0xff]
      %v447 = vld [vmem:[%s365 + $0xa8] sm:$0xff]
      %v448 = vld [vmem:[%s365 + $0xb0] sm:$0xff]
      %v449 = vld [vmem:[%s365 + $0xc8] sm:$0xff]
      %v450 = vld [vmem:[%s365 + $0xd0] sm:$0xff]
      %v451 = vld [vmem:[%s365 + $0xe8] sm:$0xff]
      %v452 = vld [vmem:[%s365 + $0xf0] sm:$0xff]
      %v453 = vld [vmem:[%s365 + $0x108] sm:$0xff]
      %v454 = vld [vmem:[%s365 + $0x110] sm:$0xff]
      %v455 = vld [vmem:[%s365 + $0x128] sm:$0xff]
      %v456 = vld [vmem:[%s365 + $0x130] sm:$0xff]
      %v457 = vld [vmem:[%s365 + $0x148] sm:$0xff]
      %v458 = vld [vmem:[%s365 + $0x150] sm:$0xff]
      %v459 = vld [vmem:[%s365 + $0x168] sm:$0xff]
      %v460 = vld [vmem:[%s365 + $0x170] sm:$0xff]
      %v461 = vld [vmem:[%s365 + $0x188] sm:$0xff]
      %v462 = vld [vmem:[%s365 + $0x190] sm:$0xff]
      %v463 = vld [vmem:[%s365 + $0x1a8] sm:$0xff]
      %v464 = vld [vmem:[%s365 + $0x1b0] sm:$0xff]
      %v465 = vld [vmem:[%s365 + $0x1c8] sm:$0xff]
      %v466 = vld [vmem:[%s365 + $0x1d0] sm:$0xff]
      %v467 = vld [vmem:[%s365 + $0x1e8] sm:$0xff]
      %v468 = vld [vmem:[%s365 + $0x1f0] sm:$0xff]
      %s469 = scalar_lea.vmem %s1, 1
      %v470 = vld [vmem:[%s469] sm:$0x1]
      %v472 = vlaneseq
      %v473 = vshrl.u32 %v472, 7
      %v474 = vsub.s32 0, %v473
      %v475 = vrot.slane %v470, %v474
      %v477 = vmul.f32 %v437, %v475
      %v478 = vmul.f32 %v438, %v475
      %v479 = vmul.f32 %v439, %v475
      %v480 = vmul.f32 %v440, %v475
      %v481 = vmul.f32 %v441, %v475
      %v482 = vmul.f32 %v442, %v475
      %v483 = vmul.f32 %v443, %v475
      %v484 = vmul.f32 %v444, %v475
      %v485 = vmul.f32 %v445, %v475
      %v486 = vmul.f32 %v446, %v475
      %v487 = vmul.f32 %v447, %v475
      %v488 = vmul.f32 %v448, %v475
      %v489 = vmul.f32 %v449, %v475
      %v490 = vmul.f32 %v450, %v475
      %v491 = vmul.f32 %v451, %v475
      %v492 = vmul.f32 %v452, %v475
      %v493 = vmul.f32 %v453, %v475
      %v494 = vmul.f32 %v454, %v475
      %v495 = vmul.f32 %v455, %v475
      %v496 = vmul.f32 %v456, %v475
      %v497 = vmul.f32 %v457, %v475
      %v498 = vmul.f32 %v458, %v475
      %v499 = vmul.f32 %v459, %v475
      %v500 = vmul.f32 %v460, %v475
      %v501 = vmul.f32 %v461, %v475
      %v502 = vmul.f32 %v462, %v475
      %v503 = vmul.f32 %v463, %v475
      %v504 = vmul.f32 %v464, %v475
      %v505 = vmul.f32 %v465, %v475
      %v506 = vmul.f32 %v466, %v475
      %v507 = vmul.f32 %v467, %v475
      %v508 = vmul.f32 %v468, %v475
      %v509 = vadd.f32 %v405, %v477
      %v510 = vadd.f32 %v406, %v478
      %v511 = vadd.f32 %v407, %v479
      %v512 = vadd.f32 %v408, %v480
      %v513 = vadd.f32 %v409, %v481
      %v514 = vadd.f32 %v410, %v482
      %v515 = vadd.f32 %v411, %v483
      %v516 = vadd.f32 %v412, %v484
      %v517 = vadd.f32 %v413, %v485
      %v518 = vadd.f32 %v414, %v486
      %v519 = vadd.f32 %v415, %v487
      %v520 = vadd.f32 %v416, %v488
      %v521 = vadd.f32 %v417, %v489
      %v522 = vadd.f32 %v418, %v490
      %v523 = vadd.f32 %v419, %v491
      %v524 = vadd.f32 %v420, %v492
      %v525 = vadd.f32 %v421, %v493
      %v526 = vadd.f32 %v422, %v494
      %v527 = vadd.f32 %v423, %v495
      %v528 = vadd.f32 %v424, %v496
      %v529 = vadd.f32 %v425, %v497
      %v530 = vadd.f32 %v426, %v498
      %v531 = vadd.f32 %v427, %v499
      %v532 = vadd.f32 %v428, %v500
      %v533 = vadd.f32 %v429, %v501
      %v534 = vadd.f32 %v430, %v502
      %v535 = vadd.f32 %v431, %v503
      %v536 = vadd.f32 %v432, %v504
      %v537 = vadd.f32 %v433, %v505
      %v538 = vadd.f32 %v434, %v506
      %v539 = vadd.f32 %v435, %v507
      %v540 = vadd.f32 %v436, %v508
      %v541 = vld [vmem:[%s365 + $0x9] sm:$0xff]
      %v542 = vld [vmem:[%s365 + $0x11] sm:$0xff]
      %v543 = vld [vmem:[%s365 + $0x29] sm:$0xff]
      %v544 = vld [vmem:[%s365 + $0x31] sm:$0xff]
      %v545 = vld [vmem:[%s365 + $0x49] sm:$0xff]
      %v546 = vld [vmem:[%s365 + $0x51] sm:$0xff]
      %v547 = vld [vmem:[%s365 + $0x69] sm:$0xff]
      %v548 = vld [vmem:[%s365 + $0x71] sm:$0xff]
      %v549 = vld [vmem:[%s365 + $0x89] sm:$0xff]
      %v550 = vld [vmem:[%s365 + $0x91] sm:$0xff]
      %v551 = vld [vmem:[%s365 + $0xa9] sm:$0xff]
      %v552 = vld [vmem:[%s365 + $0xb1] sm:$0xff]
      %v553 = vld [vmem:[%s365 + $0xc9] sm:$0xff]
      %v554 = vld [vmem:[%s365 + $0xd1] sm:$0xff]
      %v555 = vld [vmem:[%s365 + $0xe9] sm:$0xff]
      %v556 = vld [vmem:[%s365 + $0xf1] sm:$0xff]
      %v557 = vld [vmem:[%s365 + $0x109] sm:$0xff]
      %v558 = vld [vmem:[%s365 + $0x111] sm:$0xff]
      %v559 = vld [vmem:[%s365 + $0x129] sm:$0xff]
      %v560 = vld [vmem:[%s365 + $0x131] sm:$0xff]
      %v561 = vld [vmem:[%s365 + $0x149] sm:$0xff]
      %v562 = vld [vmem:[%s365 + $0x151] sm:$0xff]
      %v563 = vld [vmem:[%s365 + $0x169] sm:$0xff]
      %v564 = vld [vmem:[%s365 + $0x171] sm:$0xff]
      %v565 = vld [vmem:[%s365 + $0x189] sm:$0xff]
      %v566 = vld [vmem:[%s365 + $0x191] sm:$0xff]
      %v567 = vld [vmem:[%s365 + $0x1a9] sm:$0xff]
      %v568 = vld [vmem:[%s365 + $0x1b1] sm:$0xff]
      %v569 = vld [vmem:[%s365 + $0x1c9] sm:$0xff]
      %v570 = vld [vmem:[%s365 + $0x1d1] sm:$0xff]
      %v571 = vld [vmem:[%s365 + $0x1e9] sm:$0xff]
      %v572 = vld [vmem:[%s365 + $0x1f1] sm:$0xff]
      %s573 = scalar_lea.vmem %s1, 2
      %v574 = vld [vmem:[%s573] sm:$0x1]
      %v576 = vlaneseq
      %v577 = vshrl.u32 %v576, 7
      %v578 = vsub.s32 0, %v577
      %v579 = vrot.slane %v574, %v578
      %v581 = vmul.f32 %v541, %v579
      %v582 = vmul.f32 %v542, %v579
      %v583 = vmul.f32 %v543, %v579
      %v584 = vmul.f32 %v544, %v579
      %v585 = vmul.f32 %v545, %v579
      %v586 = vmul.f32 %v546, %v579
      %v587 = vmul.f32 %v547, %v579
      %v588 = vmul.f32 %v548, %v579
      %v589 = vmul.f32 %v549, %v579
      %v590 = vmul.f32 %v550, %v579
      %v591 = vmul.f32 %v551, %v579
      %v592 = vmul.f32 %v552, %v579
      %v593 = vmul.f32 %v553, %v579
      %v594 = vmul.f32 %v554, %v579
      %v595 = vmul.f32 %v555, %v579
      %v596 = vmul.f32 %v556, %v579
      %v597 = vmul.f32 %v557, %v579
      %v598 = vmul.f32 %v558, %v579
      %v599 = vmul.f32 %v559, %v579
      %v600 = vmul.f32 %v560, %v579
      %v601 = vmul.f32 %v561, %v579
      %v602 = vmul.f32 %v562, %v579
      %v603 = vmul.f32 %v563, %v579
      %v604 = vmul.f32 %v564, %v579
      %v605 = vmul.f32 %v565, %v579
      %v606 = vmul.f32 %v566, %v579
      %v607 = vmul.f32 %v567, %v579
      %v608 = vmul.f32 %v568, %v579
      %v609 = vmul.f32 %v569, %v579
      %v610 = vmul.f32 %v570, %v579
      %v611 = vmul.f32 %v571, %v579
      %v612 = vmul.f32 %v572, %v579
      %v613 = vadd.f32 %v509, %v581
      %v614 = vadd.f32 %v510, %v582
      %v615 = vadd.f32 %v511, %v583
      %v616 = vadd.f32 %v512, %v584
      %v617 = vadd.f32 %v513, %v585
      %v618 = vadd.f32 %v514, %v586
      %v619 = vadd.f32 %v515, %v587
      %v620 = vadd.f32 %v516, %v588
      %v621 = vadd.f32 %v517, %v589
      %v622 = vadd.f32 %v518, %v590
      %v623 = vadd.f32 %v519, %v591
      %v624 = vadd.f32 %v520, %v592
      %v625 = vadd.f32 %v521, %v593
      %v626 = vadd.f32 %v522, %v594
      %v627 = vadd.f32 %v523, %v595
      %v628 = vadd.f32 %v524, %v596
      %v629 = vadd.f32 %v525, %v597
      %v630 = vadd.f32 %v526, %v598
      %v631 = vadd.f32 %v527, %v599
      %v632 = vadd.f32 %v528, %v600
      %v633 = vadd.f32 %v529, %v601
      %v634 = vadd.f32 %v530, %v602
      %v635 = vadd.f32 %v531, %v603
      %v636 = vadd.f32 %v532, %v604
      %v637 = vadd.f32 %v533, %v605
      %v638 = vadd.f32 %v534, %v606
      %v639 = vadd.f32 %v535, %v607
      %v640 = vadd.f32 %v536, %v608
      %v641 = vadd.f32 %v537, %v609
      %v642 = vadd.f32 %v538, %v610
      %v643 = vadd.f32 %v539, %v611
      %v644 = vadd.f32 %v540, %v612
      %v645 = vld [vmem:[%s332 + $0x7] sm:$0xff]
      %v646 = vld [vmem:[%s332 + $0xf] sm:$0xff]
      %v647 = vld [vmem:[%s332 + $0x27] sm:$0xff]
      %v648 = vld [vmem:[%s332 + $0x2f] sm:$0xff]
      %v649 = vld [vmem:[%s332 + $0x47] sm:$0xff]
      %v650 = vld [vmem:[%s332 + $0x4f] sm:$0xff]
      %v651 = vld [vmem:[%s332 + $0x67] sm:$0xff]
      %v652 = vld [vmem:[%s332 + $0x6f] sm:$0xff]
      %v653 = vld [vmem:[%s332 + $0x87] sm:$0xff]
      %v654 = vld [vmem:[%s332 + $0x8f] sm:$0xff]
      %v655 = vld [vmem:[%s332 + $0xa7] sm:$0xff]
      %v656 = vld [vmem:[%s332 + $0xaf] sm:$0xff]
      %v657 = vld [vmem:[%s332 + $0xc7] sm:$0xff]
      %v658 = vld [vmem:[%s332 + $0xcf] sm:$0xff]
      %v659 = vld [vmem:[%s332 + $0xe7] sm:$0xff]
      %v660 = vld [vmem:[%s332 + $0xef] sm:$0xff]
      %v661 = vld [vmem:[%s332 + $0x107] sm:$0xff]
      %v662 = vld [vmem:[%s332 + $0x10f] sm:$0xff]
      %v663 = vld [vmem:[%s332 + $0x127] sm:$0xff]
      %v664 = vld [vmem:[%s332 + $0x12f] sm:$0xff]
      %v665 = vld [vmem:[%s332 + $0x147] sm:$0xff]
      %v666 = vld [vmem:[%s332 + $0x14f] sm:$0xff]
      %v667 = vld [vmem:[%s332 + $0x167] sm:$0xff]
      %v668 = vld [vmem:[%s332 + $0x16f] sm:$0xff]
      %v669 = vld [vmem:[%s332 + $0x187] sm:$0xff]
      %v670 = vld [vmem:[%s332 + $0x18f] sm:$0xff]
      %v671 = vld [vmem:[%s332 + $0x1a7] sm:$0xff]
      %v672 = vld [vmem:[%s332 + $0x1af] sm:$0xff]
      %v673 = vld [vmem:[%s332 + $0x1c7] sm:$0xff]
      %v674 = vld [vmem:[%s332 + $0x1cf] sm:$0xff]
      %v675 = vld [vmem:[%s332 + $0x1e7] sm:$0xff]
      %v676 = vld [vmem:[%s332 + $0x1ef] sm:$0xff]
      %s677 = scalar_lea.vmem %s1, 3
      %v678 = vld [vmem:[%s677] sm:$0x1]
      %v680 = vlaneseq
      %v681 = vshrl.u32 %v680, 7
      %v682 = vsub.s32 0, %v681
      %v683 = vrot.slane %v678, %v682
      %v685 = vmul.f32 %v645, %v683
      %v686 = vmul.f32 %v646, %v683
      %v687 = vmul.f32 %v647, %v683
      %v688 = vmul.f32 %v648, %v683
      %v689 = vmul.f32 %v649, %v683
      %v690 = vmul.f32 %v650, %v683
      %v691 = vmul.f32 %v651, %v683
      %v692 = vmul.f32 %v652, %v683
      %v693 = vmul.f32 %v653, %v683
      %v694 = vmul.f32 %v654, %v683
      %v695 = vmul.f32 %v655, %v683
      %v696 = vmul.f32 %v656, %v683
      %v697 = vmul.f32 %v657, %v683
      %v698 = vmul.f32 %v658, %v683
      %v699 = vmul.f32 %v659, %v683
      %v700 = vmul.f32 %v660, %v683
      %v701 = vmul.f32 %v661, %v683
      %v702 = vmul.f32 %v662, %v683
      %v703 = vmul.f32 %v663, %v683
      %v704 = vmul.f32 %v664, %v683
      %v705 = vmul.f32 %v665, %v683
      %v706 = vmul.f32 %v666, %v683
      %v707 = vmul.f32 %v667, %v683
      %v708 = vmul.f32 %v668, %v683
      %v709 = vmul.f32 %v669, %v683
      %v710 = vmul.f32 %v670, %v683
      %v711 = vmul.f32 %v671, %v683
      %v712 = vmul.f32 %v672, %v683
      %v713 = vmul.f32 %v673, %v683
      %v714 = vmul.f32 %v674, %v683
      %v715 = vmul.f32 %v675, %v683
      %v716 = vmul.f32 %v676, %v683
      %v717 = vadd.f32 %v613, %v685
      %v718 = vadd.f32 %v614, %v686
      %v719 = vadd.f32 %v615, %v687
      %v720 = vadd.f32 %v616, %v688
      %v721 = vadd.f32 %v617, %v689
      %v722 = vadd.f32 %v618, %v690
      %v723 = vadd.f32 %v619, %v691
      %v724 = vadd.f32 %v620, %v692
      %v725 = vadd.f32 %v621, %v693
      %v726 = vadd.f32 %v622, %v694
      %v727 = vadd.f32 %v623, %v695
      %v728 = vadd.f32 %v624, %v696
      %v729 = vadd.f32 %v625, %v697
      %v730 = vadd.f32 %v626, %v698
      %v731 = vadd.f32 %v627, %v699
      %v732 = vadd.f32 %v628, %v700
      %v733 = vadd.f32 %v629, %v701
      %v734 = vadd.f32 %v630, %v702
      %v735 = vadd.f32 %v631, %v703
      %v736 = vadd.f32 %v632, %v704
      %v737 = vadd.f32 %v633, %v705
      %v738 = vadd.f32 %v634, %v706
      %v739 = vadd.f32 %v635, %v707
      %v740 = vadd.f32 %v636, %v708
      %v741 = vadd.f32 %v637, %v709
      %v742 = vadd.f32 %v638, %v710
      %v743 = vadd.f32 %v639, %v711
      %v744 = vadd.f32 %v640, %v712
      %v745 = vadd.f32 %v641, %v713
      %v746 = vadd.f32 %v642, %v714
      %v747 = vadd.f32 %v643, %v715
      %v748 = vadd.f32 %v644, %v716
      %v749 = vld [vmem:[%s332 + $0x8] sm:$0xff]
      %v750 = vld [vmem:[%s332 + $0x10] sm:$0xff]
      %v751 = vld [vmem:[%s332 + $0x28] sm:$0xff]
      %v752 = vld [vmem:[%s332 + $0x30] sm:$0xff]
      %v753 = vld [vmem:[%s332 + $0x48] sm:$0xff]
      %v754 = vld [vmem:[%s332 + $0x50] sm:$0xff]
      %v755 = vld [vmem:[%s332 + $0x68] sm:$0xff]
      %v756 = vld [vmem:[%s332 + $0x70] sm:$0xff]
      %v757 = vld [vmem:[%s332 + $0x88] sm:$0xff]
      %v758 = vld [vmem:[%s332 + $0x90] sm:$0xff]
      %v759 = vld [vmem:[%s332 + $0xa8] sm:$0xff]
      %v760 = vld [vmem:[%s332 + $0xb0] sm:$0xff]
      %v761 = vld [vmem:[%s332 + $0xc8] sm:$0xff]
      %v762 = vld [vmem:[%s332 + $0xd0] sm:$0xff]
      %v763 = vld [vmem:[%s332 + $0xe8] sm:$0xff]
      %v764 = vld [vmem:[%s332 + $0xf0] sm:$0xff]
      %v765 = vld [vmem:[%s332 + $0x108] sm:$0xff]
      %v766 = vld [vmem:[%s332 + $0x110] sm:$0xff]
      %v767 = vld [vmem:[%s332 + $0x128] sm:$0xff]
      %v768 = vld [vmem:[%s332 + $0x130] sm:$0xff]
      %v769 = vld [vmem:[%s332 + $0x148] sm:$0xff]
      %v770 = vld [vmem:[%s332 + $0x150] sm:$0xff]
      %v771 = vld [vmem:[%s332 + $0x168] sm:$0xff]
      %v772 = vld [vmem:[%s332 + $0x170] sm:$0xff]
      %v773 = vld [vmem:[%s332 + $0x188] sm:$0xff]
      %v774 = vld [vmem:[%s332 + $0x190] sm:$0xff]
      %v775 = vld [vmem:[%s332 + $0x1a8] sm:$0xff]
      %v776 = vld [vmem:[%s332 + $0x1b0] sm:$0xff]
      %v777 = vld [vmem:[%s332 + $0x1c8] sm:$0xff]
      %v778 = vld [vmem:[%s332 + $0x1d0] sm:$0xff]
      %v779 = vld [vmem:[%s332 + $0x1e8] sm:$0xff]
      %v780 = vld [vmem:[%s332 + $0x1f0] sm:$0xff]
      %s781 = scalar_lea.vmem %s1, 4
      %v782 = vld [vmem:[%s781] sm:$0x1]
      %v784 = vlaneseq
      %v785 = vshrl.u32 %v784, 7
      %v786 = vsub.s32 0, %v785
      %v787 = vrot.slane %v782, %v786
      %v789 = vmul.f32 %v749, %v787
      %v790 = vmul.f32 %v750, %v787
      %v791 = vmul.f32 %v751, %v787
      %v792 = vmul.f32 %v752, %v787
      %v793 = vmul.f32 %v753, %v787
      %v794 = vmul.f32 %v754, %v787
      %v795 = vmul.f32 %v755, %v787
      %v796 = vmul.f32 %v756, %v787
      %v797 = vmul.f32 %v757, %v787
      %v798 = vmul.f32 %v758, %v787
      %v799 = vmul.f32 %v759, %v787
      %v800 = vmul.f32 %v760, %v787
      %v801 = vmul.f32 %v761, %v787
      %v802 = vmul.f32 %v762, %v787
      %v803 = vmul.f32 %v763, %v787
      %v804 = vmul.f32 %v764, %v787
      %v805 = vmul.f32 %v765, %v787
      %v806 = vmul.f32 %v766, %v787
      %v807 = vmul.f32 %v767, %v787
      %v808 = vmul.f32 %v768, %v787
      %v809 = vmul.f32 %v769, %v787
      %v810 = vmul.f32 %v770, %v787
      %v811 = vmul.f32 %v771, %v787
      %v812 = vmul.f32 %v772, %v787
      %v813 = vmul.f32 %v773, %v787
      %v814 = vmul.f32 %v774, %v787
      %v815 = vmul.f32 %v775, %v787
      %v816 = vmul.f32 %v776, %v787
      %v817 = vmul.f32 %v777, %v787
      %v818 = vmul.f32 %v778, %v787
      %v819 = vmul.f32 %v779, %v787
      %v820 = vmul.f32 %v780, %v787
      %v821 = vadd.f32 %v717, %v789
      %v822 = vadd.f32 %v718, %v790
      %v823 = vadd.f32 %v719, %v791
      %v824 = vadd.f32 %v720, %v792
      %v825 = vadd.f32 %v721, %v793
      %v826 = vadd.f32 %v722, %v794
      %v827 = vadd.f32 %v723, %v795
      %v828 = vadd.f32 %v724, %v796
      %v829 = vadd.f32 %v725, %v797
      %v830 = vadd.f32 %v726, %v798
      %v831 = vadd.f32 %v727, %v799
      %v832 = vadd.f32 %v728, %v800
      %v833 = vadd.f32 %v729, %v801
      %v834 = vadd.f32 %v730, %v802
      %v835 = vadd.f32 %v731, %v803
      %v836 = vadd.f32 %v732, %v804
      %v837 = vadd.f32 %v733, %v805
      %v838 = vadd.f32 %v734, %v806
      %v839 = vadd.f32 %v735, %v807
      %v840 = vadd.f32 %v736, %v808
      %v841 = vadd.f32 %v737, %v809
      %v842 = vadd.f32 %v738, %v810
      %v843 = vadd.f32 %v739, %v811
      %v844 = vadd.f32 %v740, %v812
      %v845 = vadd.f32 %v741, %v813
      %v846 = vadd.f32 %v742, %v814
      %v847 = vadd.f32 %v743, %v815
      %v848 = vadd.f32 %v744, %v816
      %v849 = vadd.f32 %v745, %v817
      %v850 = vadd.f32 %v746, %v818
      %v851 = vadd.f32 %v747, %v819
      %v852 = vadd.f32 %v748, %v820
      %v853 = vld [vmem:[%s332 + $0x9] sm:$0xff]
      %v854 = vld [vmem:[%s332 + $0x11] sm:$0xff]
      %v855 = vld [vmem:[%s332 + $0x29] sm:$0xff]
      %v856 = vld [vmem:[%s332 + $0x31] sm:$0xff]
      %v857 = vld [vmem:[%s332 + $0x49] sm:$0xff]
      %v858 = vld [vmem:[%s332 + $0x51] sm:$0xff]
      %v859 = vld [vmem:[%s332 + $0x69] sm:$0xff]
      %v860 = vld [vmem:[%s332 + $0x71] sm:$0xff]
      %v861 = vld [vmem:[%s332 + $0x89] sm:$0xff]
      %v862 = vld [vmem:[%s332 + $0x91] sm:$0xff]
      %v863 = vld [vmem:[%s332 + $0xa9] sm:$0xff]
      %v864 = vld [vmem:[%s332 + $0xb1] sm:$0xff]
      %v865 = vld [vmem:[%s332 + $0xc9] sm:$0xff]
      %v866 = vld [vmem:[%s332 + $0xd1] sm:$0xff]
      %v867 = vld [vmem:[%s332 + $0xe9] sm:$0xff]
      %v868 = vld [vmem:[%s332 + $0xf1] sm:$0xff]
      %v869 = vld [vmem:[%s332 + $0x109] sm:$0xff]
      %v870 = vld [vmem:[%s332 + $0x111] sm:$0xff]
      %v871 = vld [vmem:[%s332 + $0x129] sm:$0xff]
      %v872 = vld [vmem:[%s332 + $0x131] sm:$0xff]
      %v873 = vld [vmem:[%s332 + $0x149] sm:$0xff]
      %v874 = vld [vmem:[%s332 + $0x151] sm:$0xff]
      %v875 = vld [vmem:[%s332 + $0x169] sm:$0xff]
      %v876 = vld [vmem:[%s332 + $0x171] sm:$0xff]
      %v877 = vld [vmem:[%s332 + $0x189] sm:$0xff]
      %v878 = vld [vmem:[%s332 + $0x191] sm:$0xff]
      %v879 = vld [vmem:[%s332 + $0x1a9] sm:$0xff]
      %v880 = vld [vmem:[%s332 + $0x1b1] sm:$0xff]
      %v881 = vld [vmem:[%s332 + $0x1c9] sm:$0xff]
      %v882 = vld [vmem:[%s332 + $0x1d1] sm:$0xff]
      %v883 = vld [vmem:[%s332 + $0x1e9] sm:$0xff]
      %v884 = vld [vmem:[%s332 + $0x1f1] sm:$0xff]
      %s885 = scalar_lea.vmem %s1, 5
      %v886 = vld [vmem:[%s885] sm:$0x1]
      %v888 = vlaneseq
      %v889 = vshrl.u32 %v888, 7
      %v890 = vsub.s32 0, %v889
      %v891 = vrot.slane %v886, %v890
      %v893 = vmul.f32 %v853, %v891
      %v894 = vmul.f32 %v854, %v891
      %v895 = vmul.f32 %v855, %v891
      %v896 = vmul.f32 %v856, %v891
      %v897 = vmul.f32 %v857, %v891
      %v898 = vmul.f32 %v858, %v891
      %v899 = vmul.f32 %v859, %v891
      %v900 = vmul.f32 %v860, %v891
      %v901 = vmul.f32 %v861, %v891
      %v902 = vmul.f32 %v862, %v891
      %v903 = vmul.f32 %v863, %v891
      %v904 = vmul.f32 %v864, %v891
      %v905 = vmul.f32 %v865, %v891
      %v906 = vmul.f32 %v866, %v891
      %v907 = vmul.f32 %v867, %v891
      %v908 = vmul.f32 %v868, %v891
      %v909 = vmul.f32 %v869, %v891
      %v910 = vmul.f32 %v870, %v891
      %v911 = vmul.f32 %v871, %v891
      %v912 = vmul.f32 %v872, %v891
      %v913 = vmul.f32 %v873, %v891
      %v914 = vmul.f32 %v874, %v891
      %v915 = vmul.f32 %v875, %v891
      %v916 = vmul.f32 %v876, %v891
      %v917 = vmul.f32 %v877, %v891
      %v918 = vmul.f32 %v878, %v891
      %v919 = vmul.f32 %v879, %v891
      %v920 = vmul.f32 %v880, %v891
      %v921 = vmul.f32 %v881, %v891
      %v922 = vmul.f32 %v882, %v891
      %v923 = vmul.f32 %v883, %v891
      %v924 = vmul.f32 %v884, %v891
      %v925 = vadd.f32 %v821, %v893
      %v926 = vadd.f32 %v822, %v894
      %v927 = vadd.f32 %v823, %v895
      %v928 = vadd.f32 %v824, %v896
      %v929 = vadd.f32 %v825, %v897
      %v930 = vadd.f32 %v826, %v898
      %v931 = vadd.f32 %v827, %v899
      %v932 = vadd.f32 %v828, %v900
      %v933 = vadd.f32 %v829, %v901
      %v934 = vadd.f32 %v830, %v902
      %v935 = vadd.f32 %v831, %v903
      %v936 = vadd.f32 %v832, %v904
      %v937 = vadd.f32 %v833, %v905
      %v938 = vadd.f32 %v834, %v906
      %v939 = vadd.f32 %v835, %v907
      %v940 = vadd.f32 %v836, %v908
      %v941 = vadd.f32 %v837, %v909
      %v942 = vadd.f32 %v838, %v910
      %v943 = vadd.f32 %v839, %v911
      %v944 = vadd.f32 %v840, %v912
      %v945 = vadd.f32 %v841, %v913
      %v946 = vadd.f32 %v842, %v914
      %v947 = vadd.f32 %v843, %v915
      %v948 = vadd.f32 %v844, %v916
      %v949 = vadd.f32 %v845, %v917
      %v950 = vadd.f32 %v846, %v918
      %v951 = vadd.f32 %v847, %v919
      %v952 = vadd.f32 %v848, %v920
      %v953 = vadd.f32 %v849, %v921
      %v954 = vadd.f32 %v850, %v922
      %v955 = vadd.f32 %v851, %v923
      %v956 = vadd.f32 %v852, %v924
      %s957 = scalar_lea.vmem [#allocation2], 288
      %v958 = vld [vmem:[%s957 + $0x7] sm:$0xff]
      %v959 = vld [vmem:[%s957 + $0xf] sm:$0xff]
      %v960 = vld [vmem:[%s957 + $0x27] sm:$0xff]
      %v961 = vld [vmem:[%s957 + $0x2f] sm:$0xff]
      %v962 = vld [vmem:[%s957 + $0x47] sm:$0xff]
      %v963 = vld [vmem:[%s957 + $0x4f] sm:$0xff]
      %v964 = vld [vmem:[%s957 + $0x67] sm:$0xff]
      %v965 = vld [vmem:[%s957 + $0x6f] sm:$0xff]
      %v966 = vld [vmem:[%s957 + $0x87] sm:$0xff]
      %v967 = vld [vmem:[%s957 + $0x8f] sm:$0xff]
      %v968 = vld [vmem:[%s957 + $0xa7] sm:$0xff]
      %v969 = vld [vmem:[%s957 + $0xaf] sm:$0xff]
      %v970 = vld [vmem:[%s957 + $0xc7] sm:$0xff]
      %v971 = vld [vmem:[%s957 + $0xcf] sm:$0xff]
      %v972 = vld [vmem:[%s957 + $0xe7] sm:$0xff]
      %v973 = vld [vmem:[%s957 + $0xef] sm:$0xff]
      %v974 = vld [vmem:[%s957 + $0x107] sm:$0xff]
      %v975 = vld [vmem:[%s957 + $0x10f] sm:$0xff]
      %v976 = vld [vmem:[%s957 + $0x127] sm:$0xff]
      %v977 = vld [vmem:[%s957 + $0x12f] sm:$0xff]
      %v978 = vld [vmem:[%s957 + $0x147] sm:$0xff]
      %v979 = vld [vmem:[%s957 + $0x14f] sm:$0xff]
      %v980 = vld [vmem:[%s957 + $0x167] sm:$0xff]
      %v981 = vld [vmem:[%s957 + $0x16f] sm:$0xff]
      %v982 = vld [vmem:[%s957 + $0x187] sm:$0xff]
      %v983 = vld [vmem:[%s957 + $0x18f] sm:$0xff]
      %v984 = vld [vmem:[%s957 + $0x1a7] sm:$0xff]
      %v985 = vld [vmem:[%s957 + $0x1af] sm:$0xff]
      %v986 = vld [vmem:[%s957 + $0x1c7] sm:$0xff]
      %v987 = vld [vmem:[%s957 + $0x1cf] sm:$0xff]
      %v988 = vld [vmem:[%s957 + $0x1e7] sm:$0xff]
      %v989 = vld [vmem:[%s957 + $0x1ef] sm:$0xff]
      %s990 = scalar_lea.vmem %s1, 6
      %v991 = vld [vmem:[%s990] sm:$0x1]
      %v993 = vlaneseq
      %v994 = vshrl.u32 %v993, 7
      %v995 = vsub.s32 0, %v994
      %v996 = vrot.slane %v991, %v995
      %v998 = vmul.f32 %v958, %v996
      %v999 = vmul.f32 %v959, %v996
      %v1000 = vmul.f32 %v960, %v996
      %v1001 = vmul.f32 %v961, %v996
      %v1002 = vmul.f32 %v962, %v996
      %v1003 = vmul.f32 %v963, %v996
      %v1004 = vmul.f32 %v964, %v996
      %v1005 = vmul.f32 %v965, %v996
      %v1006 = vmul.f32 %v966, %v996
      %v1007 = vmul.f32 %v967, %v996
      %v1008 = vmul.f32 %v968, %v996
      %v1009 = vmul.f32 %v969, %v996
      %v1010 = vmul.f32 %v970, %v996
      %v1011 = vmul.f32 %v971, %v996
      %v1012 = vmul.f32 %v972, %v996
      %v1013 = vmul.f32 %v973, %v996
      %v1014 = vmul.f32 %v974, %v996
      %v1015 = vmul.f32 %v975, %v996
      %v1016 = vmul.f32 %v976, %v996
      %v1017 = vmul.f32 %v977, %v996
      %v1018 = vmul.f32 %v978, %v996
      %v1019 = vmul.f32 %v979, %v996
      %v1020 = vmul.f32 %v980, %v996
      %v1021 = vmul.f32 %v981, %v996
      %v1022 = vmul.f32 %v982, %v996
      %v1023 = vmul.f32 %v983, %v996
      %v1024 = vmul.f32 %v984, %v996
      %v1025 = vmul.f32 %v985, %v996
      %v1026 = vmul.f32 %v986, %v996
      %v1027 = vmul.f32 %v987, %v996
      %v1028 = vmul.f32 %v988, %v996
      %v1029 = vmul.f32 %v989, %v996
      %v1030 = vadd.f32 %v925, %v998
      %v1031 = vadd.f32 %v926, %v999
      %v1032 = vadd.f32 %v927, %v1000
      %v1033 = vadd.f32 %v928, %v1001
      %v1034 = vadd.f32 %v929, %v1002
      %v1035 = vadd.f32 %v930, %v1003
      %v1036 = vadd.f32 %v931, %v1004
      %v1037 = vadd.f32 %v932, %v1005
      %v1038 = vadd.f32 %v933, %v1006
      %v1039 = vadd.f32 %v934, %v1007
      %v1040 = vadd.f32 %v935, %v1008
      %v1041 = vadd.f32 %v936, %v1009
      %v1042 = vadd.f32 %v937, %v1010
      %v1043 = vadd.f32 %v938, %v1011
      %v1044 = vadd.f32 %v939, %v1012
      %v1045 = vadd.f32 %v940, %v1013
      %v1046 = vadd.f32 %v941, %v1014
      %v1047 = vadd.f32 %v942, %v1015
      %v1048 = vadd.f32 %v943, %v1016
      %v1049 = vadd.f32 %v944, %v1017
      %v1050 = vadd.f32 %v945, %v1018
      %v1051 = vadd.f32 %v946, %v1019
      %v1052 = vadd.f32 %v947, %v1020
      %v1053 = vadd.f32 %v948, %v1021
      %v1054 = vadd.f32 %v949, %v1022
      %v1055 = vadd.f32 %v950, %v1023
      %v1056 = vadd.f32 %v951, %v1024
      %v1057 = vadd.f32 %v952, %v1025
      %v1058 = vadd.f32 %v953, %v1026
      %v1059 = vadd.f32 %v954, %v1027
      %v1060 = vadd.f32 %v955, %v1028
      %v1061 = vadd.f32 %v956, %v1029
      %v1062 = vld [vmem:[%s957 + $0x8] sm:$0xff]
      %v1063 = vld [vmem:[%s957 + $0x10] sm:$0xff]
      %v1064 = vld [vmem:[%s957 + $0x28] sm:$0xff]
      %v1065 = vld [vmem:[%s957 + $0x30] sm:$0xff]
      %v1066 = vld [vmem:[%s957 + $0x48] sm:$0xff]
      %v1067 = vld [vmem:[%s957 + $0x50] sm:$0xff]
      %v1068 = vld [vmem:[%s957 + $0x68] sm:$0xff]
      %v1069 = vld [vmem:[%s957 + $0x70] sm:$0xff]
      %v1070 = vld [vmem:[%s957 + $0x88] sm:$0xff]
      %v1071 = vld [vmem:[%s957 + $0x90] sm:$0xff]
      %v1072 = vld [vmem:[%s957 + $0xa8] sm:$0xff]
      %v1073 = vld [vmem:[%s957 + $0xb0] sm:$0xff]
      %v1074 = vld [vmem:[%s957 + $0xc8] sm:$0xff]
      %v1075 = vld [vmem:[%s957 + $0xd0] sm:$0xff]
      %v1076 = vld [vmem:[%s957 + $0xe8] sm:$0xff]
      %v1077 = vld [vmem:[%s957 + $0xf0] sm:$0xff]
      %v1078 = vld [vmem:[%s957 + $0x108] sm:$0xff]
      %v1079 = vld [vmem:[%s957 + $0x110] sm:$0xff]
      %v1080 = vld [vmem:[%s957 + $0x128] sm:$0xff]
      %v1081 = vld [vmem:[%s957 + $0x130] sm:$0xff]
      %v1082 = vld [vmem:[%s957 + $0x148] sm:$0xff]
      %v1083 = vld [vmem:[%s957 + $0x150] sm:$0xff]
      %v1084 = vld [vmem:[%s957 + $0x168] sm:$0xff]
      %v1085 = vld [vmem:[%s957 + $0x170] sm:$0xff]
      %v1086 = vld [vmem:[%s957 + $0x188] sm:$0xff]
      %v1087 = vld [vmem:[%s957 + $0x190] sm:$0xff]
      %v1088 = vld [vmem:[%s957 + $0x1a8] sm:$0xff]
      %v1089 = vld [vmem:[%s957 + $0x1b0] sm:$0xff]
      %v1090 = vld [vmem:[%s957 + $0x1c8] sm:$0xff]
      %v1091 = vld [vmem:[%s957 + $0x1d0] sm:$0xff]
      %v1092 = vld [vmem:[%s957 + $0x1e8] sm:$0xff]
      %v1093 = vld [vmem:[%s957 + $0x1f0] sm:$0xff]
      %s1094 = scalar_lea.vmem %s1, 7
      %v1095 = vld [vmem:[%s1094] sm:$0x1]
      %v1097 = vlaneseq
      %v1098 = vshrl.u32 %v1097, 7
      %v1099 = vsub.s32 0, %v1098
      %v1100 = vrot.slane %v1095, %v1099
      %v1102 = vmul.f32 %v1062, %v1100
      %v1103 = vmul.f32 %v1063, %v1100
      %v1104 = vmul.f32 %v1064, %v1100
      %v1105 = vmul.f32 %v1065, %v1100
      %v1106 = vmul.f32 %v1066, %v1100
      %v1107 = vmul.f32 %v1067, %v1100
      %v1108 = vmul.f32 %v1068, %v1100
      %v1109 = vmul.f32 %v1069, %v1100
      %v1110 = vmul.f32 %v1070, %v1100
      %v1111 = vmul.f32 %v1071, %v1100
      %v1112 = vmul.f32 %v1072, %v1100
      %v1113 = vmul.f32 %v1073, %v1100
      %v1114 = vmul.f32 %v1074, %v1100
      %v1115 = vmul.f32 %v1075, %v1100
      %v1116 = vmul.f32 %v1076, %v1100
      %v1117 = vmul.f32 %v1077, %v1100
      %v1118 = vmul.f32 %v1078, %v1100
      %v1119 = vmul.f32 %v1079, %v1100
      %v1120 = vmul.f32 %v1080, %v1100
      %v1121 = vmul.f32 %v1081, %v1100
      %v1122 = vmul.f32 %v1082, %v1100
      %v1123 = vmul.f32 %v1083, %v1100
      %v1124 = vmul.f32 %v1084, %v1100
      %v1125 = vmul.f32 %v1085, %v1100
      %v1126 = vmul.f32 %v1086, %v1100
      %v1127 = vmul.f32 %v1087, %v1100
      %v1128 = vmul.f32 %v1088, %v1100
      %v1129 = vmul.f32 %v1089, %v1100
      %v1130 = vmul.f32 %v1090, %v1100
      %v1131 = vmul.f32 %v1091, %v1100
      %v1132 = vmul.f32 %v1092, %v1100
      %v1133 = vmul.f32 %v1093, %v1100
      %v1134 = vadd.f32 %v1030, %v1102
      %v1135 = vadd.f32 %v1031, %v1103
      %v1136 = vadd.f32 %v1032, %v1104
      %v1137 = vadd.f32 %v1033, %v1105
      %v1138 = vadd.f32 %v1034, %v1106
      %v1139 = vadd.f32 %v1035, %v1107
      %v1140 = vadd.f32 %v1036, %v1108
      %v1141 = vadd.f32 %v1037, %v1109
      %v1142 = vadd.f32 %v1038, %v1110
      %v1143 = vadd.f32 %v1039, %v1111
      %v1144 = vadd.f32 %v1040, %v1112
      %v1145 = vadd.f32 %v1041, %v1113
      %v1146 = vadd.f32 %v1042, %v1114
      %v1147 = vadd.f32 %v1043, %v1115
      %v1148 = vadd.f32 %v1044, %v1116
      %v1149 = vadd.f32 %v1045, %v1117
      %v1150 = vadd.f32 %v1046, %v1118
      %v1151 = vadd.f32 %v1047, %v1119
      %v1152 = vadd.f32 %v1048, %v1120
      %v1153 = vadd.f32 %v1049, %v1121
      %v1154 = vadd.f32 %v1050, %v1122
      %v1155 = vadd.f32 %v1051, %v1123
      %v1156 = vadd.f32 %v1052, %v1124
      %v1157 = vadd.f32 %v1053, %v1125
      %v1158 = vadd.f32 %v1054, %v1126
      %v1159 = vadd.f32 %v1055, %v1127
      %v1160 = vadd.f32 %v1056, %v1128
      %v1161 = vadd.f32 %v1057, %v1129
      %v1162 = vadd.f32 %v1058, %v1130
      %v1163 = vadd.f32 %v1059, %v1131
      %v1164 = vadd.f32 %v1060, %v1132
      %v1165 = vadd.f32 %v1061, %v1133
      %v1166 = vld [vmem:[%s957 + $0x9] sm:$0xff]
      %v1167 = vld [vmem:[%s957 + $0x11] sm:$0xff]
      %v1168 = vld [vmem:[%s957 + $0x29] sm:$0xff]
      %v1169 = vld [vmem:[%s957 + $0x31] sm:$0xff]
      %v1170 = vld [vmem:[%s957 + $0x49] sm:$0xff]
      %v1171 = vld [vmem:[%s957 + $0x51] sm:$0xff]
      %v1172 = vld [vmem:[%s957 + $0x69] sm:$0xff]
      %v1173 = vld [vmem:[%s957 + $0x71] sm:$0xff]
      %v1174 = vld [vmem:[%s957 + $0x89] sm:$0xff]
      %v1175 = vld [vmem:[%s957 + $0x91] sm:$0xff]
      %v1176 = vld [vmem:[%s957 + $0xa9] sm:$0xff]
      %v1177 = vld [vmem:[%s957 + $0xb1] sm:$0xff]
      %v1178 = vld [vmem:[%s957 + $0xc9] sm:$0xff]
      %v1179 = vld [vmem:[%s957 + $0xd1] sm:$0xff]
      %v1180 = vld [vmem:[%s957 + $0xe9] sm:$0xff]
      %v1181 = vld [vmem:[%s957 + $0xf1] sm:$0xff]
      %v1182 = vld [vmem:[%s957 + $0x109] sm:$0xff]
      %v1183 = vld [vmem:[%s957 + $0x111] sm:$0xff]
      %v1184 = vld [vmem:[%s957 + $0x129] sm:$0xff]
      %v1185 = vld [vmem:[%s957 + $0x131] sm:$0xff]
      %v1186 = vld [vmem:[%s957 + $0x149] sm:$0xff]
      %v1187 = vld [vmem:[%s957 + $0x151] sm:$0xff]
      %v1188 = vld [vmem:[%s957 + $0x169] sm:$0xff]
      %v1189 = vld [vmem:[%s957 + $0x171] sm:$0xff]
      %v1190 = vld [vmem:[%s957 + $0x189] sm:$0xff]
      %v1191 = vld [vmem:[%s957 + $0x191] sm:$0xff]
      %v1192 = vld [vmem:[%s957 + $0x1a9] sm:$0xff]
      %v1193 = vld [vmem:[%s957 + $0x1b1] sm:$0xff]
      %v1194 = vld [vmem:[%s957 + $0x1c9] sm:$0xff]
      %v1195 = vld [vmem:[%s957 + $0x1d1] sm:$0xff]
      %v1196 = vld [vmem:[%s957 + $0x1e9] sm:$0xff]
      %v1197 = vld [vmem:[%s957 + $0x1f1] sm:$0xff]
      %s1198 = scalar_lea.vmem %s1, 8
      %v1199 = vld [vmem:[%s1198] sm:$0x1]
      %v1201 = vlaneseq
      %v1202 = vshrl.u32 %v1201, 7
      %v1203 = vsub.s32 0, %v1202
      %v1204 = vrot.slane %v1199, %v1203
      %v1206 = vmul.f32 %v1166, %v1204
      %v1207 = vmul.f32 %v1167, %v1204
      %v1208 = vmul.f32 %v1168, %v1204
      %v1209 = vmul.f32 %v1169, %v1204
      %v1210 = vmul.f32 %v1170, %v1204
      %v1211 = vmul.f32 %v1171, %v1204
      %v1212 = vmul.f32 %v1172, %v1204
      %v1213 = vmul.f32 %v1173, %v1204
      %v1214 = vmul.f32 %v1174, %v1204
      %v1215 = vmul.f32 %v1175, %v1204
      %v1216 = vmul.f32 %v1176, %v1204
      %v1217 = vmul.f32 %v1177, %v1204
      %v1218 = vmul.f32 %v1178, %v1204
      %v1219 = vmul.f32 %v1179, %v1204
      %v1220 = vmul.f32 %v1180, %v1204
      %v1221 = vmul.f32 %v1181, %v1204
      %v1222 = vmul.f32 %v1182, %v1204
      %v1223 = vmul.f32 %v1183, %v1204
      %v1224 = vmul.f32 %v1184, %v1204
      %v1225 = vmul.f32 %v1185, %v1204
      %v1226 = vmul.f32 %v1186, %v1204
      %v1227 = vmul.f32 %v1187, %v1204
      %v1228 = vmul.f32 %v1188, %v1204
      %v1229 = vmul.f32 %v1189, %v1204
      %v1230 = vmul.f32 %v1190, %v1204
      %v1231 = vmul.f32 %v1191, %v1204
      %v1232 = vmul.f32 %v1192, %v1204
      %v1233 = vmul.f32 %v1193, %v1204
      %v1234 = vmul.f32 %v1194, %v1204
      %v1235 = vmul.f32 %v1195, %v1204
      %v1236 = vmul.f32 %v1196, %v1204
      %v1237 = vmul.f32 %v1197, %v1204
      %v1238 = vadd.f32 %v1134, %v1206
      %v1239 = vadd.f32 %v1135, %v1207
      %v1240 = vadd.f32 %v1136, %v1208
      %v1241 = vadd.f32 %v1137, %v1209
      %v1242 = vadd.f32 %v1138, %v1210
      %v1243 = vadd.f32 %v1139, %v1211
      %v1244 = vadd.f32 %v1140, %v1212
      %v1245 = vadd.f32 %v1141, %v1213
      %v1246 = vadd.f32 %v1142, %v1214
      %v1247 = vadd.f32 %v1143, %v1215
      %v1248 = vadd.f32 %v1144, %v1216
      %v1249 = vadd.f32 %v1145, %v1217
      %v1250 = vadd.f32 %v1146, %v1218
      %v1251 = vadd.f32 %v1147, %v1219
      %v1252 = vadd.f32 %v1148, %v1220
      %v1253 = vadd.f32 %v1149, %v1221
      %v1254 = vadd.f32 %v1150, %v1222
      %v1255 = vadd.f32 %v1151, %v1223
      %v1256 = vadd.f32 %v1152, %v1224
      %v1257 = vadd.f32 %v1153, %v1225
      %v1258 = vadd.f32 %v1154, %v1226
      %v1259 = vadd.f32 %v1155, %v1227
      %v1260 = vadd.f32 %v1156, %v1228
      %v1261 = vadd.f32 %v1157, %v1229
      %v1262 = vadd.f32 %v1158, %v1230
      %v1263 = vadd.f32 %v1159, %v1231
      %v1264 = vadd.f32 %v1160, %v1232
      %v1265 = vadd.f32 %v1161, %v1233
      %v1266 = vadd.f32 %v1162, %v1234
      %v1267 = vadd.f32 %v1163, %v1235
      %v1268 = vadd.f32 %v1164, %v1236
      %v1269 = vadd.f32 %v1165, %v1237
      %v1270 = vsel %vm203, %v1238, 0.0
      %1271 = vadd.xlane.f32.xlu0 %v1270
      %v1272 = vpop.xlane.xlu0 %1271
      %v1273 = vsel %vm203, %v1239, 0.0
      %1274 = vadd.xlane.f32.xlu0 %v1273
      %v1275 = vpop.xlane.xlu0 %1274
      %v1276 = vsel %vm203, %v1240, 0.0
      %1277 = vadd.xlane.f32.xlu0 %v1276
      %v1278 = vpop.xlane.xlu0 %1277
      %v1279 = vsel %vm203, %v1241, 0.0
      %1280 = vadd.xlane.f32.xlu0 %v1279
      %v1281 = vpop.xlane.xlu0 %1280
      %v1282 = vsel %vm203, %v1242, 0.0
      %1283 = vadd.xlane.f32.xlu0 %v1282
      %v1284 = vpop.xlane.xlu0 %1283
      %v1285 = vsel %vm203, %v1243, 0.0
      %1286 = vadd.xlane.f32.xlu0 %v1285
      %v1287 = vpop.xlane.xlu0 %1286
      %v1288 = vsel %vm203, %v1244, 0.0
      %1289 = vadd.xlane.f32.xlu0 %v1288
      %v1290 = vpop.xlane.xlu0 %1289
      %v1291 = vsel %vm203, %v1245, 0.0
      %1292 = vadd.xlane.f32.xlu0 %v1291
      %v1293 = vpop.xlane.xlu0 %1292
      %v1294 = vsel %vm203, %v1246, 0.0
      %1295 = vadd.xlane.f32.xlu0 %v1294
      %v1296 = vpop.xlane.xlu0 %1295
      %v1297 = vsel %vm203, %v1247, 0.0
      %1298 = vadd.xlane.f32.xlu0 %v1297
      %v1299 = vpop.xlane.xlu0 %1298
      %v1300 = vsel %vm203, %v1248, 0.0
      %1301 = vadd.xlane.f32.xlu0 %v1300
      %v1302 = vpop.xlane.xlu0 %1301
      %v1303 = vsel %vm203, %v1249, 0.0
      %1304 = vadd.xlane.f32.xlu0 %v1303
      %v1305 = vpop.xlane.xlu0 %1304
      %v1306 = vsel %vm203, %v1250, 0.0
      %1307 = vadd.xlane.f32.xlu0 %v1306
      %v1308 = vpop.xlane.xlu0 %1307
      %v1309 = vsel %vm203, %v1251, 0.0
      %1310 = vadd.xlane.f32.xlu0 %v1309
      %v1311 = vpop.xlane.xlu0 %1310
      %v1312 = vsel %vm203, %v1252, 0.0
      %1313 = vadd.xlane.f32.xlu0 %v1312
      %v1314 = vpop.xlane.xlu0 %1313
      %v1315 = vsel %vm203, %v1253, 0.0
      %1316 = vadd.xlane.f32.xlu0 %v1315
      %v1317 = vpop.xlane.xlu0 %1316
      %v1318 = vsel %vm203, %v1254, 0.0
      %1319 = vadd.xlane.f32.xlu0 %v1318
      %v1320 = vpop.xlane.xlu0 %1319
      %v1321 = vsel %vm203, %v1255, 0.0
      %1322 = vadd.xlane.f32.xlu0 %v1321
      %v1323 = vpop.xlane.xlu0 %1322
      %v1324 = vsel %vm203, %v1256, 0.0
      %1325 = vadd.xlane.f32.xlu0 %v1324
      %v1326 = vpop.xlane.xlu0 %1325
      %v1327 = vsel %vm203, %v1257, 0.0
      %1328 = vadd.xlane.f32.xlu0 %v1327
      %v1329 = vpop.xlane.xlu0 %1328
      %v1330 = vsel %vm203, %v1258, 0.0
      %1331 = vadd.xlane.f32.xlu0 %v1330
      %v1332 = vpop.xlane.xlu0 %1331
      %v1333 = vsel %vm203, %v1259, 0.0
      %1334 = vadd.xlane.f32.xlu0 %v1333
      %v1335 = vpop.xlane.xlu0 %1334
      %v1336 = vsel %vm203, %v1260, 0.0
      %1337 = vadd.xlane.f32.xlu0 %v1336
      %v1338 = vpop.xlane.xlu0 %1337
      %v1339 = vsel %vm203, %v1261, 0.0
      %1340 = vadd.xlane.f32.xlu0 %v1339
      %v1341 = vpop.xlane.xlu0 %1340
      %v1342 = vsel %vm203, %v1262, 0.0
      %1343 = vadd.xlane.f32.xlu0 %v1342
      %v1344 = vpop.xlane.xlu0 %1343
      %v1345 = vsel %vm203, %v1263, 0.0
      %1346 = vadd.xlane.f32.xlu0 %v1345
      %v1347 = vpop.xlane.xlu0 %1346
      %v1348 = vsel %vm203, %v1264, 0.0
      %1349 = vadd.xlane.f32.xlu0 %v1348
      %v1350 = vpop.xlane.xlu0 %1349
      %v1351 = vsel %vm203, %v1265, 0.0
      %1352 = vadd.xlane.f32.xlu0 %v1351
      %v1353 = vpop.xlane.xlu0 %1352
      %v1354 = vsel %vm203, %v1266, 0.0
      %1355 = vadd.xlane.f32.xlu0 %v1354
      %v1356 = vpop.xlane.xlu0 %1355
      %v1357 = vsel %vm203, %v1267, 0.0
      %1358 = vadd.xlane.f32.xlu0 %v1357
      %v1359 = vpop.xlane.xlu0 %1358
      %v1360 = vsel %vm203, %v1268, 0.0
      %1361 = vadd.xlane.f32.xlu0 %v1360
      %v1362 = vpop.xlane.xlu0 %1361
      %v1363 = vsel %vm203, %v1269, 0.0
      %1364 = vadd.xlane.f32.xlu0 %v1363
      %v1365 = vpop.xlane.xlu0 %1364
      %v1366 = vld [vmem:[%s2] sm:$0x1]
      %v1367 = vlaneseq
      %v1368 = vshrl.u32 %v1367, 7
      %v1369 = vsub.s32 0, %v1368
      %v1370 = vrot.slane %v1366, %v1369
      %v1371 = vmul.f32 %v1272, %v1370
      %v1372 = vmul.f32 %v1275, %v1370
      %v1373 = vmul.f32 %v1278, %v1370
      %v1374 = vmul.f32 %v1281, %v1370
      %v1375 = vmul.f32 %v1284, %v1370
      %v1376 = vmul.f32 %v1287, %v1370
      %v1377 = vmul.f32 %v1290, %v1370
      %v1378 = vmul.f32 %v1293, %v1370
      %v1379 = vmul.f32 %v1296, %v1370
      %v1380 = vmul.f32 %v1299, %v1370
      %v1381 = vmul.f32 %v1302, %v1370
      %v1382 = vmul.f32 %v1305, %v1370
      %v1383 = vmul.f32 %v1308, %v1370
      %v1384 = vmul.f32 %v1311, %v1370
      %v1385 = vmul.f32 %v1314, %v1370
      %v1386 = vmul.f32 %v1317, %v1370
      %v1387 = vmul.f32 %v1320, %v1370
      %v1388 = vmul.f32 %v1323, %v1370
      %v1389 = vmul.f32 %v1326, %v1370
      %v1390 = vmul.f32 %v1329, %v1370
      %v1391 = vmul.f32 %v1332, %v1370
      %v1392 = vmul.f32 %v1335, %v1370
      %v1393 = vmul.f32 %v1338, %v1370
      %v1394 = vmul.f32 %v1341, %v1370
      %v1395 = vmul.f32 %v1344, %v1370
      %v1396 = vmul.f32 %v1347, %v1370
      %v1397 = vmul.f32 %v1350, %v1370
      %v1398 = vmul.f32 %v1353, %v1370
      %v1399 = vmul.f32 %v1356, %v1370
      %v1400 = vmul.f32 %v1359, %v1370
      %v1401 = vmul.f32 %v1362, %v1370
      %v1402 = vmul.f32 %v1365, %v1370
      %v1403 = vld [vmem:[%s2 + $0x1] sm:$0x1]
      %v1404 = vlaneseq
      %v1405 = vshrl.u32 %v1404, 7
      %v1406 = vsub.s32 0, %v1405
      %v1407 = vrot.slane %v1403, %v1406
      %v1408 = vadd.f32 %v1371, %v1407
      %v1409 = vadd.f32 %v1372, %v1407
      %v1410 = vadd.f32 %v1373, %v1407
      %v1411 = vadd.f32 %v1374, %v1407
      %v1412 = vadd.f32 %v1375, %v1407
      %v1413 = vadd.f32 %v1376, %v1407
      %v1414 = vadd.f32 %v1377, %v1407
      %v1415 = vadd.f32 %v1378, %v1407
      %v1416 = vadd.f32 %v1379, %v1407
      %v1417 = vadd.f32 %v1380, %v1407
      %v1418 = vadd.f32 %v1381, %v1407
      %v1419 = vadd.f32 %v1382, %v1407
      %v1420 = vadd.f32 %v1383, %v1407
      %v1421 = vadd.f32 %v1384, %v1407
      %v1422 = vadd.f32 %v1385, %v1407
      %v1423 = vadd.f32 %v1386, %v1407
      %v1424 = vadd.f32 %v1387, %v1407
      %v1425 = vadd.f32 %v1388, %v1407
      %v1426 = vadd.f32 %v1389, %v1407
      %v1427 = vadd.f32 %v1390, %v1407
      %v1428 = vadd.f32 %v1391, %v1407
      %v1429 = vadd.f32 %v1392, %v1407
      %v1430 = vadd.f32 %v1393, %v1407
      %v1431 = vadd.f32 %v1394, %v1407
      %v1432 = vadd.f32 %v1395, %v1407
      %v1433 = vadd.f32 %v1396, %v1407
      %v1434 = vadd.f32 %v1397, %v1407
      %v1435 = vadd.f32 %v1398, %v1407
      %v1436 = vadd.f32 %v1399, %v1407
      %v1437 = vadd.f32 %v1400, %v1407
      %v1438 = vadd.f32 %v1401, %v1407
      %v1439 = vadd.f32 %v1402, %v1407
      %vm1440 = vcmp.ge.f32.partialorder %v1408, 0.0
      %vm1441 = vcmp.ge.f32.partialorder %v1409, 0.0
      %vm1442 = vcmp.ge.f32.partialorder %v1410, 0.0
      %vm1443 = vcmp.ge.f32.partialorder %v1411, 0.0
      %vm1444 = vcmp.ge.f32.partialorder %v1412, 0.0
      %vm1445 = vcmp.ge.f32.partialorder %v1413, 0.0
      %vm1446 = vcmp.ge.f32.partialorder %v1414, 0.0
      %vm1447 = vcmp.ge.f32.partialorder %v1415, 0.0
      %vm1448 = vcmp.ge.f32.partialorder %v1416, 0.0
      %vm1449 = vcmp.ge.f32.partialorder %v1417, 0.0
      %vm1450 = vcmp.ge.f32.partialorder %v1418, 0.0
      %vm1451 = vcmp.ge.f32.partialorder %v1419, 0.0
      %vm1452 = vcmp.ge.f32.partialorder %v1420, 0.0
      %vm1453 = vcmp.ge.f32.partialorder %v1421, 0.0
      %vm1454 = vcmp.ge.f32.partialorder %v1422, 0.0
      %vm1455 = vcmp.ge.f32.partialorder %v1423, 0.0
      %vm1456 = vcmp.ge.f32.partialorder %v1424, 0.0
      %vm1457 = vcmp.ge.f32.partialorder %v1425, 0.0
      %vm1458 = vcmp.ge.f32.partialorder %v1426, 0.0
      %vm1459 = vcmp.ge.f32.partialorder %v1427, 0.0
      %vm1460 = vcmp.ge.f32.partialorder %v1428, 0.0
      %vm1461 = vcmp.ge.f32.partialorder %v1429, 0.0
      %vm1462 = vcmp.ge.f32.partialorder %v1430, 0.0
      %vm1463 = vcmp.ge.f32.partialorder %v1431, 0.0
      %vm1464 = vcmp.ge.f32.partialorder %v1432, 0.0
      %vm1465 = vcmp.ge.f32.partialorder %v1433, 0.0
      %vm1466 = vcmp.ge.f32.partialorder %v1434, 0.0
      %vm1467 = vcmp.ge.f32.partialorder %v1435, 0.0
      %vm1468 = vcmp.ge.f32.partialorder %v1436, 0.0
      %vm1469 = vcmp.ge.f32.partialorder %v1437, 0.0
      %vm1470 = vcmp.ge.f32.partialorder %v1438, 0.0
      %vm1471 = vcmp.ge.f32.partialorder %v1439, 0.0
      %v1472 = vmul.f32 %v1408, 0.01
      %v1473 = vmul.f32 %v1409, 0.01
      %v1474 = vmul.f32 %v1410, 0.01
      %v1475 = vmul.f32 %v1411, 0.01
      %v1476 = vmul.f32 %v1412, 0.01
      %v1477 = vmul.f32 %v1413, 0.01
      %v1478 = vmul.f32 %v1414, 0.01
      %v1479 = vmul.f32 %v1415, 0.01
      %v1480 = vmul.f32 %v1416, 0.01
      %v1481 = vmul.f32 %v1417, 0.01
      %v1482 = vmul.f32 %v1418, 0.01
      %v1483 = vmul.f32 %v1419, 0.01
      %v1484 = vmul.f32 %v1420, 0.01
      %v1485 = vmul.f32 %v1421, 0.01
      %v1486 = vmul.f32 %v1422, 0.01
      %v1487 = vmul.f32 %v1423, 0.01
      %v1488 = vmul.f32 %v1424, 0.01
      %v1489 = vmul.f32 %v1425, 0.01
      %v1490 = vmul.f32 %v1426, 0.01
      %v1491 = vmul.f32 %v1427, 0.01
      %v1492 = vmul.f32 %v1428, 0.01
      %v1493 = vmul.f32 %v1429, 0.01
      %v1494 = vmul.f32 %v1430, 0.01
      %v1495 = vmul.f32 %v1431, 0.01
      %v1496 = vmul.f32 %v1432, 0.01
      %v1497 = vmul.f32 %v1433, 0.01
      %v1498 = vmul.f32 %v1434, 0.01
      %v1499 = vmul.f32 %v1435, 0.01
      %v1500 = vmul.f32 %v1436, 0.01
      %v1501 = vmul.f32 %v1437, 0.01
      %v1502 = vmul.f32 %v1438, 0.01
      %v1503 = vmul.f32 %v1439, 0.01
      %v1504 = vsel %vm1440, %v1408, %v1472
      %v1505 = vsel %vm1441, %v1409, %v1473
      %v1506 = vsel %vm1442, %v1410, %v1474
      %v1507 = vsel %vm1443, %v1411, %v1475
      %v1508 = vsel %vm1444, %v1412, %v1476
      %v1509 = vsel %vm1445, %v1413, %v1477
      %v1510 = vsel %vm1446, %v1414, %v1478
      %v1511 = vsel %vm1447, %v1415, %v1479
      %v1512 = vsel %vm1448, %v1416, %v1480
      %v1513 = vsel %vm1449, %v1417, %v1481
      %v1514 = vsel %vm1450, %v1418, %v1482
      %v1515 = vsel %vm1451, %v1419, %v1483
      %v1516 = vsel %vm1452, %v1420, %v1484
      %v1517 = vsel %vm1453, %v1421, %v1485
      %v1518 = vsel %vm1454, %v1422, %v1486
      %v1519 = vsel %vm1455, %v1423, %v1487
      %v1520 = vsel %vm1456, %v1424, %v1488
      %v1521 = vsel %vm1457, %v1425, %v1489
      %v1522 = vsel %vm1458, %v1426, %v1490
      %v1523 = vsel %vm1459, %v1427, %v1491
      %v1524 = vsel %vm1460, %v1428, %v1492
      %v1525 = vsel %vm1461, %v1429, %v1493
      %v1526 = vsel %vm1462, %v1430, %v1494
      %v1527 = vsel %vm1463, %v1431, %v1495
      %v1528 = vsel %vm1464, %v1432, %v1496
      %v1529 = vsel %vm1465, %v1433, %v1497
      %v1530 = vsel %vm1466, %v1434, %v1498
      %v1531 = vsel %vm1467, %v1435, %v1499
      %v1532 = vsel %vm1468, %v1436, %v1500
      %v1533 = vsel %vm1469, %v1437, %v1501
      %v1534 = vsel %vm1470, %v1438, %v1502
      %v1535 = vsel %vm1471, %v1439, %v1503
      %vm1536 = vcmask 7168
      %1537 = vst.msk [vmem:[%s170] sm:$0xff] %vm1536, %v1504
      %1538 = vst.msk [vmem:[%s170 + $0x8] sm:$0xff] %vm1536, %v1505
      %1539 = vst.msk [vmem:[%s170 + $0x10] sm:$0xff] %vm1536, %v1506
      %1540 = vst.msk [vmem:[%s170 + $0x18] sm:$0xff] %vm1536, %v1507
      %1541 = vst.msk [vmem:[%s170 + $0x20] sm:$0xff] %vm1536, %v1508
      %1542 = vst.msk [vmem:[%s170 + $0x28] sm:$0xff] %vm1536, %v1509
      %1543 = vst.msk [vmem:[%s170 + $0x30] sm:$0xff] %vm1536, %v1510
      %1544 = vst.msk [vmem:[%s170 + $0x38] sm:$0xff] %vm1536, %v1511
      %1545 = vst.msk [vmem:[%s170 + $0x40] sm:$0xff] %vm1536, %v1512
      %1546 = vst.msk [vmem:[%s170 + $0x48] sm:$0xff] %vm1536, %v1513
      %1547 = vst.msk [vmem:[%s170 + $0x50] sm:$0xff] %vm1536, %v1514
      %1548 = vst.msk [vmem:[%s170 + $0x58] sm:$0xff] %vm1536, %v1515
      %1549 = vst.msk [vmem:[%s170 + $0x60] sm:$0xff] %vm1536, %v1516
      %1550 = vst.msk [vmem:[%s170 + $0x68] sm:$0xff] %vm1536, %v1517
      %1551 = vst.msk [vmem:[%s170 + $0x70] sm:$0xff] %vm1536, %v1518
      %1552 = vst.msk [vmem:[%s170 + $0x78] sm:$0xff] %vm1536, %v1519
      %1553 = vst.msk [vmem:[%s170 + $0x80] sm:$0xff] %vm1536, %v1520
      %1554 = vst.msk [vmem:[%s170 + $0x88] sm:$0xff] %vm1536, %v1521
      %1555 = vst.msk [vmem:[%s170 + $0x90] sm:$0xff] %vm1536, %v1522
      %1556 = vst.msk [vmem:[%s170 + $0x98] sm:$0xff] %vm1536, %v1523
      %1557 = vst.msk [vmem:[%s170 + $0xa0] sm:$0xff] %vm1536, %v1524
      %1558 = vst.msk [vmem:[%s170 + $0xa8] sm:$0xff] %vm1536, %v1525
      %1559 = vst.msk [vmem:[%s170 + $0xb0] sm:$0xff] %vm1536, %v1526
      %1560 = vst.msk [vmem:[%s170 + $0xb8] sm:$0xff] %vm1536, %v1527
      %1561 = vst.msk [vmem:[%s170 + $0xc0] sm:$0xff] %vm1536, %v1528
      %1562 = vst.msk [vmem:[%s170 + $0xc8] sm:$0xff] %vm1536, %v1529
      %1563 = vst.msk [vmem:[%s170 + $0xd0] sm:$0xff] %vm1536, %v1530
      %1564 = vst.msk [vmem:[%s170 + $0xd8] sm:$0xff] %vm1536, %v1531
      %1565 = vst.msk [vmem:[%s170 + $0xe0] sm:$0xff] %vm1536, %v1532
      %1566 = vst.msk [vmem:[%s170 + $0xe8] sm:$0xff] %vm1536, %v1533
      %1567 = vst.msk [vmem:[%s170 + $0xf0] sm:$0xff] %vm1536, %v1534
      %1568 = vst.msk [vmem:[%s170 + $0xf8] sm:$0xff] %vm1536, %v1535
      %p1569 = scmp.lt.s32.totalorder %s14, 1
      %s1570 = scalar_select %p1569, %s14, 1
      %s1571 = smul.addr %s1570, 32
      %s1572 = smul.addr %s1571, 8
      %s1573 = scalar_lea.vmem %s3, %s1572
      // Predicated region
      $region33: #{tpu_custom_call.1} parent=31 // pred_check
        %p1574 = pneg %p100
      $region34: #{tpu_custom_call.1} parent=31 // pred_check_branch
        %1576 = sbr.rel (%p1574) target = $region36
      $region35: #{tpu_custom_call.1} parent=31 // pred_region
        _
      $region36: #{tpu_custom_call.1} parent=31 // pred_fallthru
        _
    $region32: #{tpu_custom_call.1} parent=5 // pred_fallthru
      _
    %p1577 = scmp.le.s32.totalorder 2, %s9
    // Predicated region
    $region37: #{tpu_custom_call.1} parent=5 // pred_check
      %p1578 = pneg %p1577
    $region38: #{tpu_custom_call.1} parent=5 // pred_check_branch
      %1580 = sbr.rel (%p1578) target = $region40
    $region39: #{tpu_custom_call.1} parent=5 // pred_region
      %s1581 = ssub.s32 %s9, 2
      // Predicated region
      $region41: #{tpu_custom_call.1} parent=39 // pred_check
        %p1582 = pneg %p106
      $region42: #{tpu_custom_call.1} parent=39 // pred_check_branch
        %1584 = sbr.rel (%p1582) target = $region44
      $region43: #{tpu_custom_call.1} parent=39 // pred_region
        %p1585 = scmp.lt.s32.totalorder %s15, 1
        %s1586 = scalar_select %p1585, %s15, 1
        %s1587 = smul.addr %s1586, 32
        %s1588 = smul.addr %s1587, 8
        %s1589 = scalar_lea.vmem %s3, %s1588
      $region44: #{tpu_custom_call.1} parent=39 // pred_fallthru
        _
    $region40: #{tpu_custom_call.1} parent=5 // pred_fallthru
      _
  $region6: #{tpu_custom_call.1} parent=0 // loop_footer
    %s13 = sadd.s32 1, %s9
  $region7: #{tpu_custom_call.1} parent=0 // loop_footer_branch
    %8 = sbr.rel target = $region3
  $region8: #{tpu_custom_call.1} parent=0 // loop_exit
    _

</llo_original>
